<compile_context>
chip_gen: v5e
topology: v5e:2x2
jax: 0.10.0
libtpu: 0.0.40
codegen_flags: <defaults>
</compile_context>

<pallas_src>
import jax
import jax.numpy as jnp
from jax.experimental import pallas as pl
from jax.experimental.pallas import tpu as pltpu


def _silu_gate(h):
    """SwiGLU gate from the fused (tm, 2*t_hd) projection, f32 math.

    Single-EUP sigmoid: sigmoid(x) = 0.5*(tanh(0.5*x)+1). One tanh per hidden
    element instead of exp + reciprocal (EUP is the binding VLIW slot on
    v6e/v7x for C=128 shapes).
    """
    t = h.shape[-1] // 2
    h1 = h[:, :t]
    h3 = h[:, t:]
    sig = 0.5 * (jnp.tanh(0.5 * h1) + 1.0)
    # TODO(synk): on v7x, casting h1 to bf16 before tanh roughly doubles EUP
    # throughput; kept in f32 here for accuracy across all generations.
    return (h1 * sig) * h3


def ffn_kernel_resident(x_ref, w13_ref, w2_ref, o_ref):
    # x_ref:   (tm, C)       row tile of tokens
    # w13_ref: (C, 2*Hd)     [W1^T | W3^T] fully resident
    # w2_ref:  (Hd, C)       W2^T fully resident
    # o_ref:   (tm, C)
    x = x_ref[...]
    h = jnp.dot(x, w13_ref[...], preferred_element_type=jnp.float32)
    g = _silu_gate(h)
    o_ref[...] = jnp.dot(
        g.astype(w2_ref.dtype), w2_ref[...], preferred_element_type=jnp.float32
    ).astype(o_ref.dtype)


def ffn_kernel_tiled(x_ref, w13_ref, w2_ref, o_ref, acc_ref):
    # Hidden dim tiled: reduction grid axis (last), f32 (tm, C) accumulator.
    k = pl.program_id(1)

    @pl.when(k == 0)
    def _():
        acc_ref[...] = jnp.zeros_like(acc_ref)

    x = x_ref[...]
    h = jnp.dot(x, w13_ref[...], preferred_element_type=jnp.float32)
    g = _silu_gate(h)
    acc_ref[...] += jnp.dot(
        g.astype(w2_ref.dtype), w2_ref[...], preferred_element_type=jnp.float32
    )

    @pl.when(k == pl.num_programs(1) - 1)
    def _():
        o_ref[...] = acc_ref[...].astype(o_ref.dtype)


def prepare_ffn_weights(w1, w3, w2, *, t_hd=None, dtype=jnp.bfloat16):
    """One-time weight prep (call outside the per-step forward).

    Inputs in PyTorch nn.Linear (out_features, in_features) layout:
      w1, w3: (Hd, C);  w2: (C, Hd)
    Returns:
      w13: (C, 2*Hd)  hidden-tile-interleaved [W1^T tile | W3^T tile] blocks
      w2t: (Hd, C)    W2 transposed to (in, out)
      t_hd: hidden-dim tile size actually used

    Prefer t_hd = full Hd (resident weights) whenever 6*C*Hd bytes of bf16
    weights fit the per-TC VMEM budget; when tiling, prefer t_hd a multiple
    of 256 (MXU depth on v6e/v7x) and at least 128 (lane-aligned gate split).
    """
    hd, c = w1.shape
    if t_hd is None:
        t_hd = hd
    assert hd % t_hd == 0, "hidden dim must be divisible by t_hd"
    n_hd = hd // t_hd
    w1t = w1.T.reshape(c, n_hd, t_hd)
    w3t = w3.T.reshape(c, n_hd, t_hd)
    w13 = jnp.stack([w1t, w3t], axis=2).reshape(c, 2 * hd).astype(dtype)
    w2t = w2.T.astype(dtype)
    return w13, w2t, t_hd


def feed_forward_pallas(x, w13, w2t, t_hd, *, tm=256,
                        vmem_limit_bytes=48 * 1024 * 1024):
    """x: (B, H, W, C) channels-last.  w13/w2t from prepare_ffn_weights.

    tm: row-tile size (multiple of 128). Raise to 512(-1024) for large token
    counts; for small N keep n_row_tiles >= 2 so both TCs get work on v7x.
    vmem_limit_bytes default (48 MiB) is safe on v7x's 64 MiB/TC; can be
    raised on v5e/v6e (128 MiB VMEM) for bigger tm / resident weights.
    """
    b, h, w_, c = x.shape
    hd, c2 = w2t.shape
    assert c2 == c and w13.shape == (c, 2 * hd)
    assert hd % t_hd == 0
    n_hd = hd // t_hd

    n = b * h * w_
    xf = x.reshape(n, c)
    n_row_tiles = pl.cdiv(n, tm)   # ragged last block handled by masked writes

    if n_hd == 1:
        # Fast path: weights fully resident (constant block index) and
        # single-buffered; no reduction axis, no accumulator scratch.
        wkw = dict(pipeline_mode=pl.Buffered(1))
        grid_spec = pltpu.PrefetchScalarGridSpec(
            num_scalar_prefetch=0,
            grid=(n_row_tiles,),
            in_specs=[
                pl.BlockSpec((tm, c), lambda i: (i, 0)),               # x rows
                pl.BlockSpec((c, 2 * hd), lambda i: (0, 0), **wkw),    # [W1|W3]^T
                pl.BlockSpec((hd, c), lambda i: (0, 0), **wkw),        # W2^T
            ],
            out_specs=pl.BlockSpec((tm, c), lambda i: (i, 0)),
            scratch_shapes=[],
        )
        kernel = ffn_kernel_resident
        dim_sem = ("parallel",)
    else:
        # VMEM-bounded path for large Hd: hidden-dim reduction axis last.
        # (On v7x, if this path is forced, consider pl.Buffered(3) on the two
        #  weight specs and a larger tm so weight DMA hides behind the matmuls.)
        grid_spec = pltpu.PrefetchScalarGridSpec(
            num_scalar_prefetch=0,
            grid=(n_row_tiles, n_hd),
            in_specs=[
                pl.BlockSpec((tm, c), lambda i, k: (i, 0)),            # x rows
                pl.BlockSpec((c, 2 * t_hd), lambda i, k: (0, k)),      # [W1|W3]^T tile
                pl.BlockSpec((t_hd, c), lambda i, k: (k, 0)),          # W2^T tile
            ],
            out_specs=pl.BlockSpec((tm, c), lambda i, k: (i, 0)),
            scratch_shapes=[pltpu.VMEM((tm, c), jnp.float32)],
        )
        kernel = ffn_kernel_tiled
        dim_sem = ("parallel", "arbitrary")

    out_flat = pl.pallas_call(
        kernel,
        out_shape=jax.ShapeDtypeStruct((n, c), x.dtype),
        grid_spec=grid_spec,
        compiler_params=pltpu.CompilerParams(
            dimension_semantics=dim_sem,
            vmem_limit_bytes=vmem_limit_bytes,
        ),
    )(xf, w13, w2t)

    return out_flat.reshape(b, h, w_, c)


def feed_forward_ref(x, w1, w3, w2):
    b, h, w_, c = x.shape
    xf = x.reshape(b, h * w_, c).astype(jnp.float32)
    w1f = w1.astype(jnp.float32)
    w3f = w3.astype(jnp.float32)
    w2f = w2.astype(jnp.float32)
    h1 = xf @ w1f.T
    h3 = xf @ w3f.T
    y = (h1 * jax.nn.sigmoid(h1)) * h3
    return (y @ w2f.T).reshape(b, h, w_, c)


if __name__ == "__main__":
    # Module config: FeedForward(dim=128, hidden_dim=384) -> hidden = int(2*384/3) = 256
    dim = 128          # C multiple of 128 -> lane-dense output stores
    hidden_dim = 384
    hidden = int(2 * hidden_dim / 3)   # 256

    key = jax.random.PRNGKey(0)
    kx, k1, k2, k3 = jax.random.split(key, 4)

    # Deterministic synthetic weights in PyTorch nn.Linear (out, in) layout.
    w1 = (jax.random.normal(k1, (hidden, dim), dtype=jnp.float32) * 0.05).astype(jnp.bfloat16)
    w3 = (jax.random.normal(k3, (hidden, dim), dtype=jnp.float32) * 0.05).astype(jnp.bfloat16)
    w2 = (jax.random.normal(k2, (dim, hidden), dtype=jnp.float32) * 0.05).astype(jnp.bfloat16)

    # Path 1: resident-weight fast path (n_hd == 1), 512 tokens -> 2 row tiles.
    B, H, W = 2, 16, 16
    x = jax.random.normal(kx, (B, H, W, dim), dtype=jnp.float32).astype(jnp.bfloat16)
    ref = feed_forward_ref(x, w1, w3, w2)

    w13, w2t, thd = prepare_ffn_weights(w1, w3, w2, t_hd=hidden)
    out = jax.block_until_ready(feed_forward_pallas(x, w13, w2t, thd, tm=256))
    assert out.shape == (B, H, W, dim)
    assert jnp.allclose(out.astype(jnp.float32), ref, atol=2e-2, rtol=2e-2), \
        "mismatch vs reference (resident-weight path)"

    # Path 2: hidden dim tiled (reduction grid axis + f32 accumulator); the
    # VMEM-bounded configuration for large Hd / v7x's 64 MiB per TC.
    w13b, w2tb, thdb = prepare_ffn_weights(w1, w3, w2, t_hd=hidden // 2)
    out_b = jax.block_until_ready(feed_forward_pallas(x, w13b, w2tb, thdb, tm=256))
    assert jnp.allclose(out_b.astype(jnp.float32), ref, atol=2e-2, rtol=2e-2), \
        "mismatch vs reference (hidden-tiled path)"

    # Path 3: ragged token count (480 tokens, tm=256) -> masked last row block,
    # no host-side pad/slice copies.
    B2, H2, W2 = 2, 16, 15
    x2 = jax.random.normal(kx, (B2, H2, W2, dim), dtype=jnp.float32).astype(jnp.bfloat16)
    ref2 = feed_forward_ref(x2, w1, w3, w2)
    out2 = jax.block_until_ready(feed_forward_pallas(x2, w13, w2t, thd, tm=256))
    assert out2.shape == (B2, H2, W2, dim)
    assert jnp.allclose(out2.astype(jnp.float32), ref2, atol=2e-2, rtol=2e-2), \
        "mismatch vs reference (ragged-rows path)"

    print("KERNEL_OK")
</pallas_src>

<mosaic_0001>
module attributes {stable_mosaic.version = 11 : i64} {
  func.func @ffn_kernel_resident(%arg0: i32, %arg1: memref<256x128xbf16, #tpu.memory_space<vmem>>, %arg2: memref<128x512xbf16, #tpu.memory_space<vmem>>, %arg3: memref<256x128xbf16, #tpu.memory_space<vmem>>, %arg4: memref<256x128xbf16, #tpu.memory_space<vmem>>) attributes {dimension_semantics = [#tpu.dimension_semantics<parallel>], iteration_bounds = array<i64: 2>, scalar_prefetch = 0 : i64, scratch_operands = 0 : i64, tpu.core_type = #tpu.core_type<tc>, window_params = [{transform_indices = @transform_0, window_bounds = array<i64: 256, 128>}, {pipeline_mode = #tpu.pipeline_mode<synchronous>, transform_indices = @transform_1, window_bounds = array<i64: 128, 512>}, {pipeline_mode = #tpu.pipeline_mode<synchronous>, transform_indices = @transform_2, window_bounds = array<i64: 256, 128>}, {transform_indices = @transform_3, window_bounds = array<i64: 256, 128>}]} {
    %c0 = arith.constant 0 : index
    %c0_0 = arith.constant 0 : index
    %0 = vector.load %arg1[%c0, %c0_0] : memref<256x128xbf16, #tpu.memory_space<vmem>>, vector<256x128xbf16>
    %c0_1 = arith.constant 0 : index
    %c0_2 = arith.constant 0 : index
    %1 = vector.load %arg2[%c0_1, %c0_2] : memref<128x512xbf16, #tpu.memory_space<vmem>>, vector<128x512xbf16>
    %cst = arith.constant dense<0.000000e+00> : vector<256x512xf32>
    %2 = tpu.matmul %0, %1, %cst {dimension_numbers = #tpu.dot_dimension_numbers<[1], [0], [0], [1], [0, 0, 1, 1], [], []>} : vector<256x128xbf16>, vector<128x512xbf16>, vector<256x512xf32> -> vector<256x512xf32>
    %3 = vector.extract_strided_slice %2 {offsets = [0, 0], sizes = [256, 256], strides = [1, 1]} : vector<256x512xf32> to vector<256x256xf32>
    %4 = vector.extract_strided_slice %2 {offsets = [0, 256], sizes = [256, 256], strides = [1, 1]} : vector<256x512xf32> to vector<256x256xf32>
    %cst_3 = arith.constant 5.000000e-01 : f32
    %5 = vector.broadcast %cst_3 : f32 to vector<256x256xf32>
    %6 = arith.mulf %5, %3 : vector<256x256xf32>
    %7 = math.tanh %6 : vector<256x256xf32>
    %cst_4 = arith.constant 1.000000e+00 : f32
    %8 = vector.broadcast %cst_4 : f32 to vector<256x256xf32>
    %9 = arith.addf %7, %8 : vector<256x256xf32>
    %cst_5 = arith.constant 5.000000e-01 : f32
    %10 = vector.broadcast %cst_5 : f32 to vector<256x256xf32>
    %11 = arith.mulf %10, %9 : vector<256x256xf32>
    %12 = arith.mulf %3, %11 : vector<256x256xf32>
    %13 = arith.mulf %12, %4 : vector<256x256xf32>
    %14 = arith.truncf %13 : vector<256x256xf32> to vector<256x256xbf16>
    %c0_6 = arith.constant 0 : index
    %c0_7 = arith.constant 0 : index
    %15 = vector.load %arg3[%c0_6, %c0_7] : memref<256x128xbf16, #tpu.memory_space<vmem>>, vector<256x128xbf16>
    %cst_8 = arith.constant dense<0.000000e+00> : vector<256x128xf32>
    %16 = tpu.matmul %14, %15, %cst_8 {dimension_numbers = #tpu.dot_dimension_numbers<[1], [0], [0], [1], [0, 0, 1, 1], [], []>} : vector<256x256xbf16>, vector<256x128xbf16>, vector<256x128xf32> -> vector<256x128xf32>
    %17 = arith.truncf %16 : vector<256x128xf32> to vector<256x128xbf16>
    %c0_9 = arith.constant 0 : index
    %c0_10 = arith.constant 0 : index
    %18 = vector.load %arg4[%c0_9, %c0_10] : memref<256x128xbf16, #tpu.memory_space<vmem>>, vector<256x128xbf16>
    tpu.vector_store %arg4[%c0_9, %c0_10], %17 {strides = array<i32>} : memref<256x128xbf16, #tpu.memory_space<vmem>>, vector<256x128xbf16>,
    return
  }
  func.func @transform_0(%arg0: i32) -> (i32, i32) {
    %c0_i32 = arith.constant 0 : i32
    %c0_i32_0 = arith.constant 0 : i32
    return %arg0, %c0_i32 : i32, i32
  }
  func.func @transform_1(%arg0: i32) -> (i32, i32) {
    %c0_i32 = arith.constant 0 : i32
    %c0_i32_0 = arith.constant 0 : i32
    %c0_i32_1 = arith.constant 0 : i32
    return %c0_i32, %c0_i32_0 : i32, i32
  }
  func.func @transform_2(%arg0: i32) -> (i32, i32) {
    %c0_i32 = arith.constant 0 : i32
    %c0_i32_0 = arith.constant 0 : i32
    %c0_i32_1 = arith.constant 0 : i32
    return %c0_i32, %c0_i32_0 : i32, i32
  }
  func.func @transform_3(%arg0: i32) -> (i32, i32) {
    %c0_i32 = arith.constant 0 : i32
    %c0_i32_0 = arith.constant 0 : i32
    return %arg0, %c0_i32 : i32, i32
  }
}

</mosaic_0001>

<llo_original>
// kernel: tpu_custom_call.1
$region0: #{tpu_custom_call.1}
  #allocation0 [shape = 'u32[]', space=smem, size = 0x4, offset = 0x4, fixed_abs, tag = 'smem constant byte address 0x4 - core index']
  #allocation1 [shape = 'u32[72,128]{1,0:T(1,128)}', space=vmem, size = 0x9000, scoped, tag = 'internal scratch']
  %s0 = inlined_call_operand.hbm [shape: bf16[512,128], index: 0, kind: input, shape index: {}]
  %s1 = inlined_call_operand.hbm [shape: bf16[128,512], index: 1, kind: input, shape index: {}]
  %s2 = inlined_call_operand.hbm [shape: bf16[256,128], index: 2, kind: input, shape index: {}]
  %s3 = inlined_call_operand.hbm [shape: bf16[512,128], index: 3, kind: output, shape index: {}]
  %s4 = sld [smem:[#allocation0]]
  $region57: #{tpu_custom_call.1} parent=0
    _
  %s6 = ssub.s32 1, %s4
  %s7 = scalar_select 0, %s6, %s4
  $region1: #{tpu_custom_call.1} parent=0
    #allocation2 [shape = 'u8[131072]{0}', space=vmem, size = 0x20000, scoped, tag = 'input window, operand 0']
    #allocation3 [shape = 's32[2]{0}', space=sflag, size = 0x8, scoped, tag = 'scoped memory for tpu_custom_call.1']
    #allocation4 [shape = 's32[2]{0}', space=sflag, size = 0x8, scoped, tag = 'scoped memory for tpu_custom_call.1']
    #allocation5 [shape = 'u8[131072]{0}', space=vmem, size = 0x20000, scoped, tag = 'input window, operand 1, single buffered']
    #allocation6 [shape = 's32[1]{0}', space=sflag, size = 0x4, scoped, tag = 'scoped memory for tpu_custom_call.1']
    #allocation7 [shape = 'u8[65536]{0}', space=vmem, size = 0x10000, scoped, tag = 'input window, operand 2, single buffered']
    #allocation8 [shape = 'u8[131072]{0}', space=vmem, size = 0x20000, scoped, tag = 'output window, operand 0']
    %8 = vsyncpa [#allocation3], 0
    %s9 = scalar_lea.sflag [#allocation3], 1
    %10 = vsyncpa %s9, 0
    %11 = vsyncpa [#allocation6], 0
    %12 = vsyncpa [#allocation4], 0
    %s13 = scalar_lea.sflag [#allocation4], 1
    %14 = vsyncpa %s13, 0
    loop: start=0, step=1, limit=4
    $region2: #{tpu_custom_call.1} parent=1 // loop_pre_header
      _
    $region3: #{tpu_custom_call.1} parent=1 // loop_header
      %s16 = sphi 0, %s20
      %p17 = scmp.ge.s32.totalorder %s16, 4
      %s26 = sphi 0, %s28
      %s29 = sphi 0, %s26
      %s30 = sphi 0, %s29
      %s46 = sphi 0, %s30
      %s50 = sphi 0, %s50
      %s52 = sphi 0, %s50
      %s53 = sphi 0, %s52
      %s67 = sphi 0, %s53
      %s71 = sphi 0, %s71
      %s73 = sphi 0, %s71
      %s74 = sphi 0, %s73
      %s88 = sphi 0, %s74
      %s94 = sphi 0, %s96
      %s97 = sphi 0, %s94
      %s98 = sphi 0, %s97
      %s114 = sphi 0, %s98
    $region4: #{tpu_custom_call.1} parent=1 // loop_header_branch
      %19 = sbr.rel (%p17) target = $region8
    $region5: #{tpu_custom_call.1} parent=1 // loop_body
      %s21 = ssub.s32 %s16, 1
      %s22 = ssub.s32 %s16, 2
      %s23 = sadd.s32 %s16, 1
      %s24 = ssub.s32 %s16, %s23
      %p25 = scmp.eq.s32.totalorder %s24, 0
      %s27 = sadd.s32 %s26, 1
      %s28 = scalar_select %p25, %s26, %s27
      %p31 = pneg %p25
      %p32 = scmp.eq.s32.totalorder %s16, 1
      %p33 = por %p31, %p32
      %p34 = scmp.ne.s32.totalorder %s26, %s29
      %p35 = scmp.eq.s32.totalorder %s16, 0
      %p36 = por %p34, %p35
      %p37 = scmp.ne.s32.totalorder %s26, %s29
      %p38 = scmp.eq.s32.totalorder %s21, 1
      %p39 = por %p37, %p38
      %p40 = scmp.ne.s32.totalorder %s29, %s30
      %p41 = scmp.eq.s32.totalorder %s21, 0
      %p42 = por %p40, %p41
      %p43 = scmp.ne.s32.totalorder %s29, %s30
      %p44 = scmp.eq.s32.totalorder %s22, 1
      %p45 = por %p43, %p44
      %p47 = scmp.ne.s32.totalorder %s30, %s46
      %p48 = scmp.eq.s32.totalorder %s22, 0
      %p49 = por %p47, %p48
      %s51 = sadd.s32 %s50, 1
      %p54 = scmp.eq.s32.totalorder %s16, 1
      %p55 = scmp.ne.s32.totalorder %s50, %s52
      %p56 = scmp.eq.s32.totalorder %s16, 0
      %p57 = por %p55, %p56
      %p58 = scmp.ne.s32.totalorder %s50, %s52
      %p59 = scmp.eq.s32.totalorder %s21, 1
      %p60 = por %p58, %p59
      %p61 = scmp.ne.s32.totalorder %s52, %s53
      %p62 = scmp.eq.s32.totalorder %s21, 0
      %p63 = por %p61, %p62
      %p64 = scmp.ne.s32.totalorder %s52, %s53
      %p65 = scmp.eq.s32.totalorder %s22, 1
      %p66 = por %p64, %p65
      %p68 = scmp.ne.s32.totalorder %s53, %s67
      %p69 = scmp.eq.s32.totalorder %s22, 0
      %p70 = por %p68, %p69
      %s72 = sadd.s32 %s71, 1
      %p75 = scmp.eq.s32.totalorder %s16, 1
      %p76 = scmp.ne.s32.totalorder %s71, %s73
      %p77 = scmp.eq.s32.totalorder %s16, 0
      %p78 = por %p76, %p77
      %p79 = scmp.ne.s32.totalorder %s71, %s73
      %p80 = scmp.eq.s32.totalorder %s21, 1
      %p81 = por %p79, %p80
      %p82 = scmp.ne.s32.totalorder %s73, %s74
      %p83 = scmp.eq.s32.totalorder %s21, 0
      %p84 = por %p82, %p83
      %p85 = scmp.ne.s32.totalorder %s73, %s74
      %p86 = scmp.eq.s32.totalorder %s22, 1
      %p87 = por %p85, %p86
      %p89 = scmp.ne.s32.totalorder %s74, %s88
      %p90 = scmp.eq.s32.totalorder %s22, 0
      %p91 = por %p89, %p90
      %s92 = ssub.s32 %s16, %s23
      %p93 = scmp.eq.s32.totalorder %s92, 0
      %s95 = sadd.s32 %s94, 1
      %s96 = scalar_select %p93, %s94, %s95
      %p99 = pneg %p93
      %p100 = scmp.eq.s32.totalorder %s16, 1
      %p101 = por %p99, %p100
      %p102 = scmp.ne.s32.totalorder %s94, %s97
      %p103 = scmp.eq.s32.totalorder %s16, 0
      %p104 = por %p102, %p103
      %p105 = scmp.ne.s32.totalorder %s94, %s97
      %p106 = scmp.eq.s32.totalorder %s21, 1
      %p107 = por %p105, %p106
      %p108 = scmp.ne.s32.totalorder %s97, %s98
      %p109 = scmp.eq.s32.totalorder %s21, 0
      %p110 = por %p108, %p109
      %p111 = scmp.ne.s32.totalorder %s97, %s98
      %p112 = scmp.eq.s32.totalorder %s22, 1
      %p113 = por %p111, %p112
      %p115 = scmp.ne.s32.totalorder %s98, %s114
      %p116 = scmp.eq.s32.totalorder %s22, 0
      %p117 = por %p115, %p116
      %p118 = scmp.le.s32.totalorder 1, %s16
      %p119 = scmp.lt.s32.totalorder %s16, 3
      %p120 = pnand %p118, %p119
      %p121 = pneg %p120
      // Predicated region
      $region9: #{tpu_custom_call.1} parent=5 // pred_check
        _
      $region10: #{tpu_custom_call.1} parent=5 // pred_check_branch
        %123 = sbr.rel (%p120) target = $region12
      $region11: #{tpu_custom_call.1} parent=5 // pred_region
        %s124 = ssub.s32 %s16, 1
        // Predicated region
        $region13: #{tpu_custom_call.1} parent=11 // pred_check
          %p125 = pneg %p63
        $region14: #{tpu_custom_call.1} parent=11 // pred_check_branch
          %127 = sbr.rel (%p125) target = $region16
        $region15: #{tpu_custom_call.1} parent=11 // pred_region
          %129 = vsyncadd [#allocation6], 0
          %s130 = sshll.u32 %s1, 4
          %s131 = int_to_ptr.hbm [resolvable:$true] %s130
          %s132 = sshll.u32 [#allocation5], 4
          %s133 = int_to_ptr.vmem [resolvable:$true] %s132
          %138 = dma.hbm_to_vmem [thread:$0]  %s131, 4096, %s133, [#allocation6], 256, 256, 16
        $region16: #{tpu_custom_call.1} parent=11 // pred_fallthru
          _
        // Predicated region
        $region17: #{tpu_custom_call.1} parent=11 // pred_check
          %p139 = pneg %p84
        $region18: #{tpu_custom_call.1} parent=11 // pred_check_branch
          %141 = sbr.rel (%p139) target = $region20
        $region19: #{tpu_custom_call.1} parent=11 // pred_region
          %143 = vsyncadd [#allocation6], 0
          %s144 = sshll.u32 %s2, 4
          %s145 = int_to_ptr.hbm [resolvable:$true] %s144
          %s146 = sshll.u32 [#allocation7], 4
          %s147 = int_to_ptr.vmem [resolvable:$true] %s146
          %152 = dma.hbm_to_vmem [thread:$0]  %s145, 2048, %s147, [#allocation6], 64, 64, 4
        $region20: #{tpu_custom_call.1} parent=11 // pred_fallthru
          _
      $region12: #{tpu_custom_call.1} parent=5 // pred_fallthru
        _
      %p153 = scmp.lt.s32.totalorder %s16, 2
      // Predicated region
      $region21: #{tpu_custom_call.1} parent=5 // pred_check
        %p154 = pneg %p153
      $region22: #{tpu_custom_call.1} parent=5 // pred_check_branch
        %156 = sbr.rel (%p154) target = $region24
      $region23: #{tpu_custom_call.1} parent=5 // pred_region
        // Predicated region
        $region25: #{tpu_custom_call.1} parent=23 // pred_check
          %p157 = pneg %p36
        $region26: #{tpu_custom_call.1} parent=23 // pred_check_branch
          %159 = sbr.rel (%p157) target = $region28
        $region27: #{tpu_custom_call.1} parent=23 // pred_region
          %s160 = sand.u32 %s26, 1
          %s161 = scalar_lea.sflag [#allocation3], %s160
          %s162 = sand.u32 %s26, 1
          %s163 = smul.addr %s162, 128
          %s164 = scalar_lea.vmem [#allocation2], %s163
          %s165 = smul.u32 32, %s16
          %167 = vsyncadd %s161, 0
          %s168 = smul.addr %s165, 4
          %s169 = scalar_lea.hbm %s0, %s168
          %s170 = sshll.u32 %s169, 4
          %s171 = int_to_ptr.hbm [resolvable:$true] %s170
          %s172 = sshll.u32 %s164, 4
          %s173 = int_to_ptr.vmem [resolvable:$true] %s172
          %178 = dma.hbm_to_vmem [thread:$0]  %s171, 2048, %s173, %s161, 64, 64, 4
        $region28: #{tpu_custom_call.1} parent=23 // pred_fallthru
          _
      $region24: #{tpu_custom_call.1} parent=5 // pred_fallthru
        _
      %p179 = scmp.le.s32.totalorder 1, %s16
      %p180 = scmp.lt.s32.totalorder %s16, 3
      %p181 = pnand %p179, %p180
      %p182 = pneg %p181
      // Predicated region
      $region29: #{tpu_custom_call.1} parent=5 // pred_check
        _
      $region30: #{tpu_custom_call.1} parent=5 // pred_check_branch
        %184 = sbr.rel (%p181) target = $region32
      $region31: #{tpu_custom_call.1} parent=5 // pred_region
        %s185 = ssub.s32 %s16, 1
        %s186 = sand.u32 %s29, 1
        %s187 = scalar_lea.sflag [#allocation3], %s186
        %s188 = sand.u32 %s29, 1
        %s189 = smul.addr %s188, 128
        %s190 = scalar_lea.vmem [#allocation2], %s189
        // Predicated region
        $region33: #{tpu_custom_call.1} parent=31 // pred_check
          %p191 = pneg %p42
        $region34: #{tpu_custom_call.1} parent=31 // pred_check_branch
          %193 = sbr.rel (%p191) target = $region36
        $region35: #{tpu_custom_call.1} parent=31 // pred_region
          %195 = dma.done %s187, 2048
        $region36: #{tpu_custom_call.1} parent=31 // pred_fallthru
          _
        // Predicated region
        $region37: #{tpu_custom_call.1} parent=31 // pred_check
          %p196 = pneg %p63
        $region38: #{tpu_custom_call.1} parent=31 // pred_check_branch
          %198 = sbr.rel (%p196) target = $region40
        $region39: #{tpu_custom_call.1} parent=31 // pred_region
          %200 = dma.done [#allocation6], 4096
        $region40: #{tpu_custom_call.1} parent=31 // pred_fallthru
          _
        // Predicated region
        $region41: #{tpu_custom_call.1} parent=31 // pred_check
          %p201 = pneg %p84
        $region42: #{tpu_custom_call.1} parent=31 // pred_check_branch
          %203 = sbr.rel (%p201) target = $region44
        $region43: #{tpu_custom_call.1} parent=31 // pred_region
          %205 = dma.done [#allocation6], 2048
        $region44: #{tpu_custom_call.1} parent=31 // pred_fallthru
          _
        %s206 = sand.u32 %s29, 1
        %s207 = scalar_lea.sflag [#allocation3], %s206
        %s208 = sand.u32 %s29, 1
        %s209 = smul.addr %s208, 128
        %s210 = scalar_lea.vmem [#allocation2], %s209
        %p211 = pneg %p42
        %p212 = pneg %p39
        %p213 = pneg %p63
        %p214 = pneg %p60
        %p215 = pneg %p84
        %p216 = pneg %p81
        %p217 = pneg %p110
        %p218 = pneg %p107
        %s219 = sand.u32 %s97, 1
        %s220 = scalar_lea.sflag [#allocation4], %s219
        %s221 = sand.u32 %s97, 1
        %s222 = smul.addr %s221, 128
        %s223 = scalar_lea.vmem [#allocation8], %s222
        %s224 = smul.u32 32, %s21
        %s225 = smul.u32 32, %s21
        %v226 = vld [vmem:[%s190] sm:$0xf]
        %v227 = vld [vmem:[%s190 + $0x4] sm:$0xf]
        %v228 = vld [vmem:[%s190 + $0x8] sm:$0xf]
        %v229 = vld [vmem:[%s190 + $0xc] sm:$0xf]
        %v230 = vld [vmem:[%s190 + $0x10] sm:$0xf]
        %v231 = vld [vmem:[%s190 + $0x14] sm:$0xf]
        %v232 = vld [vmem:[%s190 + $0x18] sm:$0xf]
        %v233 = vld [vmem:[%s190 + $0x1c] sm:$0xf]
        %v234 = vld [vmem:[%s190 + $0x20] sm:$0xf]
        %v235 = vld [vmem:[%s190 + $0x24] sm:$0xf]
        %v236 = vld [vmem:[%s190 + $0x28] sm:$0xf]
        %v237 = vld [vmem:[%s190 + $0x2c] sm:$0xf]
        %v238 = vld [vmem:[%s190 + $0x30] sm:$0xf]
        %v239 = vld [vmem:[%s190 + $0x34] sm:$0xf]
        %v240 = vld [vmem:[%s190 + $0x38] sm:$0xf]
        %v241 = vld [vmem:[%s190 + $0x3c] sm:$0xf]
        %v242 = vld [vmem:[%s190 + $0x40] sm:$0xf]
        %v243 = vld [vmem:[%s190 + $0x44] sm:$0xf]
        %v244 = vld [vmem:[%s190 + $0x48] sm:$0xf]
        %v245 = vld [vmem:[%s190 + $0x4c] sm:$0xf]
        %v246 = vld [vmem:[%s190 + $0x50] sm:$0xf]
        %v247 = vld [vmem:[%s190 + $0x54] sm:$0xf]
        %v248 = vld [vmem:[%s190 + $0x58] sm:$0xf]
        %v249 = vld [vmem:[%s190 + $0x5c] sm:$0xf]
        %v250 = vld [vmem:[%s190 + $0x60] sm:$0xf]
        %v251 = vld [vmem:[%s190 + $0x64] sm:$0xf]
        %v252 = vld [vmem:[%s190 + $0x68] sm:$0xf]
        %v253 = vld [vmem:[%s190 + $0x6c] sm:$0xf]
        %v254 = vld [vmem:[%s190 + $0x70] sm:$0xf]
        %v255 = vld [vmem:[%s190 + $0x74] sm:$0xf]
        %v256 = vld [vmem:[%s190 + $0x78] sm:$0xf]
        %v257 = vld [vmem:[%s190 + $0x7c] sm:$0xf]
        %v258 = vld [vmem:[#allocation5] sm:$0xff]
        %v259 = vld [vmem:[#allocation5 + $0x8] sm:$0xff]
        %v260 = vld [vmem:[#allocation5 + $0x10] sm:$0xff]
        %v261 = vld [vmem:[#allocation5 + $0x18] sm:$0xff]
        %v262 = vld [vmem:[#allocation5 + $0x20] sm:$0xff]
        %v263 = vld [vmem:[#allocation5 + $0x28] sm:$0xff]
        %v264 = vld [vmem:[#allocation5 + $0x30] sm:$0xff]
        %v265 = vld [vmem:[#allocation5 + $0x38] sm:$0xff]
        %v266 = vld [vmem:[#allocation5 + $0x40] sm:$0xff]
        %v267 = vld [vmem:[#allocation5 + $0x48] sm:$0xff]
        %v268 = vld [vmem:[#allocation5 + $0x50] sm:$0xff]
        %v269 = vld [vmem:[#allocation5 + $0x58] sm:$0xff]
        %v270 = vld [vmem:[#allocation5 + $0x60] sm:$0xff]
        %v271 = vld [vmem:[#allocation5 + $0x68] sm:$0xff]
        %v272 = vld [vmem:[#allocation5 + $0x70] sm:$0xff]
        %v273 = vld [vmem:[#allocation5 + $0x78] sm:$0xff]
        %v274 = vld [vmem:[#allocation5 + $0x80] sm:$0xff]
        %v275 = vld [vmem:[#allocation5 + $0x88] sm:$0xff]
        %v276 = vld [vmem:[#allocation5 + $0x90] sm:$0xff]
        %v277 = vld [vmem:[#allocation5 + $0x98] sm:$0xff]
        %v278 = vld [vmem:[#allocation5 + $0xa0] sm:$0xff]
        %v279 = vld [vmem:[#allocation5 + $0xa8] sm:$0xff]
        %v280 = vld [vmem:[#allocation5 + $0xb0] sm:$0xff]
        %v281 = vld [vmem:[#allocation5 + $0xb8] sm:$0xff]
        %v282 = vld [vmem:[#allocation5 + $0xc0] sm:$0xff]
        %v283 = vld [vmem:[#allocation5 + $0xc8] sm:$0xff]
        %v284 = vld [vmem:[#allocation5 + $0xd0] sm:$0xff]
        %v285 = vld [vmem:[#allocation5 + $0xd8] sm:$0xff]
        %v286 = vld [vmem:[#allocation5 + $0xe0] sm:$0xff]
        %v287 = vld [vmem:[#allocation5 + $0xe8] sm:$0xff]
        %v288 = vld [vmem:[#allocation5 + $0xf0] sm:$0xff]
        %v289 = vld [vmem:[#allocation5 + $0xf8] sm:$0xff]
        %v322 = vunpack.c.l.b16 %v226
        %v323 = vunpack.c.l.b16 %v227
        %v324 = vunpack.c.l.b16 %v228
        %v325 = vunpack.c.l.b16 %v229
        %v326 = vunpack.c.l.b16 %v230
        %v327 = vunpack.c.l.b16 %v231
        %v328 = vunpack.c.l.b16 %v232
        %v329 = vunpack.c.l.b16 %v233
        %v330 = vunpack.c.l.b16 %v234
        %v331 = vunpack.c.l.b16 %v235
        %v332 = vunpack.c.l.b16 %v236
        %v333 = vunpack.c.l.b16 %v237
        %v334 = vunpack.c.l.b16 %v238
        %v335 = vunpack.c.l.b16 %v239
        %v336 = vunpack.c.l.b16 %v240
        %v337 = vunpack.c.l.b16 %v241
        %v338 = vunpack.c.l.b16 %v242
        %v339 = vunpack.c.l.b16 %v243
        %v340 = vunpack.c.l.b16 %v244
        %v341 = vunpack.c.l.b16 %v245
        %v342 = vunpack.c.l.b16 %v246
        %v343 = vunpack.c.l.b16 %v247
        %v344 = vunpack.c.l.b16 %v248
        %v345 = vunpack.c.l.b16 %v249
        %v346 = vunpack.c.l.b16 %v250
        %v347 = vunpack.c.l.b16 %v251
        %v348 = vunpack.c.l.b16 %v252
        %v349 = vunpack.c.l.b16 %v253
        %v350 = vunpack.c.l.b16 %v254
        %v351 = vunpack.c.l.b16 %v255
        %v352 = vunpack.c.l.b16 %v256
        %v353 = vunpack.c.l.b16 %v257
        %v354 = vpack.c.b16 %v323, %v322
        %v355 = vpack.c.b16 %v325, %v324
        %v356 = vpack.c.b16 %v327, %v326
        %v357 = vpack.c.b16 %v329, %v328
        %v358 = vpack.c.b16 %v331, %v330
        %v359 = vpack.c.b16 %v333, %v332
        %v360 = vpack.c.b16 %v335, %v334
        %v361 = vpack.c.b16 %v337, %v336
        %v362 = vpack.c.b16 %v339, %v338
        %v363 = vpack.c.b16 %v341, %v340
        %v364 = vpack.c.b16 %v343, %v342
        %v365 = vpack.c.b16 %v345, %v344
        %v366 = vpack.c.b16 %v347, %v346
        %v367 = vpack.c.b16 %v349, %v348
        %v368 = vpack.c.b16 %v351, %v350
        %v369 = vpack.c.b16 %v353, %v352
        %v418 = vunpack.c.l.b16 %v258
        %v419 = vunpack.c.h.b16 %v258
        %v420 = vunpack.c.l.b16 %v259
        %v421 = vunpack.c.h.b16 %v259
        %v422 = vunpack.c.l.b16 %v260
        %v423 = vunpack.c.h.b16 %v260
        %v424 = vunpack.c.l.b16 %v261
        %v425 = vunpack.c.h.b16 %v261
        %v426 = vunpack.c.l.b16 %v262
        %v427 = vunpack.c.h.b16 %v262
        %v428 = vunpack.c.l.b16 %v263
        %v429 = vunpack.c.h.b16 %v263
        %v430 = vunpack.c.l.b16 %v264
        %v431 = vunpack.c.h.b16 %v264
        %v432 = vunpack.c.l.b16 %v265
        %v433 = vunpack.c.h.b16 %v265
        %v434 = vunpack.c.l.b16 %v266
        %v435 = vunpack.c.h.b16 %v266
        %v436 = vunpack.c.l.b16 %v267
        %v437 = vunpack.c.h.b16 %v267
        %v438 = vunpack.c.l.b16 %v268
        %v439 = vunpack.c.h.b16 %v268
        %v440 = vunpack.c.l.b16 %v269
        %v441 = vunpack.c.h.b16 %v269
        %v442 = vunpack.c.l.b16 %v270
        %v443 = vunpack.c.h.b16 %v270
        %v444 = vunpack.c.l.b16 %v271
        %v445 = vunpack.c.h.b16 %v271
        %v446 = vunpack.c.l.b16 %v272
        %v447 = vunpack.c.h.b16 %v272
        %v448 = vunpack.c.l.b16 %v273
        %v449 = vunpack.c.h.b16 %v273
        %v450 = vunpack.c.l.b16 %v274
        %v451 = vunpack.c.h.b16 %v274
        %v452 = vunpack.c.l.b16 %v275
        %v453 = vunpack.c.h.b16 %v275
        %v454 = vunpack.c.l.b16 %v276
        %v455 = vunpack.c.h.b16 %v276
        %v456 = vunpack.c.l.b16 %v277
        %v457 = vunpack.c.h.b16 %v277
        %v458 = vunpack.c.l.b16 %v278
        %v459 = vunpack.c.h.b16 %v278
        %v460 = vunpack.c.l.b16 %v279
        %v461 = vunpack.c.h.b16 %v279
        %v462 = vunpack.c.l.b16 %v280
        %v463 = vunpack.c.h.b16 %v280
        %v464 = vunpack.c.l.b16 %v281
        %v465 = vunpack.c.h.b16 %v281
        %v466 = vunpack.c.l.b16 %v282
        %v467 = vunpack.c.h.b16 %v282
        %v468 = vunpack.c.l.b16 %v283
        %v469 = vunpack.c.h.b16 %v283
        %v470 = vunpack.c.l.b16 %v284
        %v471 = vunpack.c.h.b16 %v284
        %v472 = vunpack.c.l.b16 %v285
        %v473 = vunpack.c.h.b16 %v285
        %v474 = vunpack.c.l.b16 %v286
        %v475 = vunpack.c.h.b16 %v286
        %v476 = vunpack.c.l.b16 %v287
        %v477 = vunpack.c.h.b16 %v287
        %v478 = vunpack.c.l.b16 %v288
        %v479 = vunpack.c.h.b16 %v288
        %v480 = vunpack.c.l.b16 %v289
        %v481 = vunpack.c.h.b16 %v289
        %v482 = vpack.c.b16 %v422, %v418
        %v483 = vpack.c.b16 %v423, %v419
        %v484 = vpack.c.b16 %v424, %v420
        %v485 = vpack.c.b16 %v425, %v421
        %v486 = vpack.c.b16 %v430, %v426
        %v487 = vpack.c.b16 %v431, %v427
        %v488 = vpack.c.b16 %v432, %v428
        %v489 = vpack.c.b16 %v433, %v429
        %v490 = vpack.c.b16 %v438, %v434
        %v491 = vpack.c.b16 %v439, %v435
        %v492 = vpack.c.b16 %v440, %v436
        %v493 = vpack.c.b16 %v441, %v437
        %v494 = vpack.c.b16 %v446, %v442
        %v495 = vpack.c.b16 %v447, %v443
        %v496 = vpack.c.b16 %v448, %v444
        %v497 = vpack.c.b16 %v449, %v445
        %v498 = vpack.c.b16 %v454, %v450
        %v499 = vpack.c.b16 %v455, %v451
        %v500 = vpack.c.b16 %v456, %v452
        %v501 = vpack.c.b16 %v457, %v453
        %v502 = vpack.c.b16 %v462, %v458
        %v503 = vpack.c.b16 %v463, %v459
        %v504 = vpack.c.b16 %v464, %v460
        %v505 = vpack.c.b16 %v465, %v461
        %v506 = vpack.c.b16 %v470, %v466
        %v507 = vpack.c.b16 %v471, %v467
        %v508 = vpack.c.b16 %v472, %v468
        %v509 = vpack.c.b16 %v473, %v469
        %v510 = vpack.c.b16 %v478, %v474
        %v511 = vpack.c.b16 %v479, %v475
        %v512 = vpack.c.b16 %v480, %v476
        %v513 = vpack.c.b16 %v481, %v477
        %546 = vmatpush.bf16.msra.mxu0 %v510
        %547 = vmatpush.bf16.msra.mxu0 %v506
        %548 = vmatpush.bf16.msra.mxu0 %v502
        %549 = vmatpush.bf16.msra.mxu0 %v498
        %550 = vmatpush.bf16.msra.mxu0 %v494
        %551 = vmatpush.bf16.msra.mxu0 %v490
        %552 = vmatpush.bf16.msra.mxu0 %v486
        %553 = vmatpush.bf16.msra.mxu0 %v482
        %554 = vmatmul.bf16.gmra.mxu0 %v354
        %v555 = vpop.f32.mrf.mxu0
        %v556 = vadd.f32 0.0, %v555
        %v557 = vpop.f32.mrf.mxu0
        %v558 = vadd.f32 0.0, %v557
        %559 = vmatmul.bf16.gmra.mxu0 %v355
        %v560 = vpop.f32.mrf.mxu0
        %v561 = vadd.f32 0.0, %v560
        %v562 = vpop.f32.mrf.mxu0
        %v563 = vadd.f32 0.0, %v562
        %564 = vmatmul.bf16.gmra.mxu0 %v356
        %v565 = vpop.f32.mrf.mxu0
        %v566 = vadd.f32 0.0, %v565
        %v567 = vpop.f32.mrf.mxu0
        %v568 = vadd.f32 0.0, %v567
        %569 = vmatmul.bf16.gmra.mxu0 %v357
        %v570 = vpop.f32.mrf.mxu0
        %v571 = vadd.f32 0.0, %v570
        %v572 = vpop.f32.mrf.mxu0
        %v573 = vadd.f32 0.0, %v572
        %574 = vmatmul.bf16.gmra.mxu0 %v358
        %v575 = vpop.f32.mrf.mxu0
        %v576 = vadd.f32 0.0, %v575
        %v577 = vpop.f32.mrf.mxu0
        %v578 = vadd.f32 0.0, %v577
        %579 = vmatmul.bf16.gmra.mxu0 %v359
        %v580 = vpop.f32.mrf.mxu0
        %v581 = vadd.f32 0.0, %v580
        %v582 = vpop.f32.mrf.mxu0
        %v583 = vadd.f32 0.0, %v582
        %584 = vmatmul.bf16.gmra.mxu0 %v360
        %v585 = vpop.f32.mrf.mxu0
        %v586 = vadd.f32 0.0, %v585
        %v587 = vpop.f32.mrf.mxu0
        %v588 = vadd.f32 0.0, %v587
        %589 = vmatmul.bf16.gmra.mxu0 %v361
        %v590 = vpop.f32.mrf.mxu0
        %v591 = vadd.f32 0.0, %v590
        %v592 = vpop.f32.mrf.mxu0
        %v593 = vadd.f32 0.0, %v592
        %594 = vmatmul.bf16.gmra.mxu0 %v362
        %v595 = vpop.f32.mrf.mxu0
        %v596 = vadd.f32 0.0, %v595
        %v597 = vpop.f32.mrf.mxu0
        %v598 = vadd.f32 0.0, %v597
        %599 = vmatmul.bf16.gmra.mxu0 %v363
        %v600 = vpop.f32.mrf.mxu0
        %v601 = vadd.f32 0.0, %v600
        %v602 = vpop.f32.mrf.mxu0
        %v603 = vadd.f32 0.0, %v602
        %604 = vmatmul.bf16.gmra.mxu0 %v364
        %v605 = vpop.f32.mrf.mxu0
        %v606 = vadd.f32 0.0, %v605
        %v607 = vpop.f32.mrf.mxu0
        %v608 = vadd.f32 0.0, %v607
        %609 = vmatmul.bf16.gmra.mxu0 %v365
        %v610 = vpop.f32.mrf.mxu0
        %v611 = vadd.f32 0.0, %v610
        %v612 = vpop.f32.mrf.mxu0
        %v613 = vadd.f32 0.0, %v612
        %614 = vmatmul.bf16.gmra.mxu0 %v366
        %v615 = vpop.f32.mrf.mxu0
        %v616 = vadd.f32 0.0, %v615
        %v617 = vpop.f32.mrf.mxu0
        %v618 = vadd.f32 0.0, %v617
        %619 = vmatmul.bf16.gmra.mxu0 %v367
        %v620 = vpop.f32.mrf.mxu0
        %v621 = vadd.f32 0.0, %v620
        %v622 = vpop.f32.mrf.mxu0
        %v623 = vadd.f32 0.0, %v622
        %624 = vmatmul.bf16.gmra.mxu0 %v368
        %v625 = vpop.f32.mrf.mxu0
        %v626 = vadd.f32 0.0, %v625
        %v627 = vpop.f32.mrf.mxu0
        %v628 = vadd.f32 0.0, %v627
        %629 = vmatmul.bf16.gmra.mxu0 %v369
        %v630 = vpop.f32.mrf.mxu0
        %v631 = vadd.f32 0.0, %v630
        %v632 = vpop.f32.mrf.mxu0
        %v633 = vadd.f32 0.0, %v632
        %634 = vdwg.mxu0
        %635 = vmatpush.bf16.msra.mxu0 %v511
        %636 = vmatpush.bf16.msra.mxu0 %v507
        %637 = vmatpush.bf16.msra.mxu0 %v503
        %638 = vmatpush.bf16.msra.mxu0 %v499
        %639 = vmatpush.bf16.msra.mxu0 %v495
        %640 = vmatpush.bf16.msra.mxu0 %v491
        %641 = vmatpush.bf16.msra.mxu0 %v487
        %642 = vmatpush.bf16.msra.mxu0 %v483
        %643 = vmatmul.bf16.gmra.mxu0 %v354
        %v644 = vpop.f32.mrf.mxu0
        %v645 = vadd.f32 0.0, %v644
        %v646 = vpop.f32.mrf.mxu0
        %v647 = vadd.f32 0.0, %v646
        %648 = vmatmul.bf16.gmra.mxu0 %v355
        %v649 = vpop.f32.mrf.mxu0
        %v650 = vadd.f32 0.0, %v649
        %v651 = vpop.f32.mrf.mxu0
        %v652 = vadd.f32 0.0, %v651
        %653 = vmatmul.bf16.gmra.mxu0 %v356
        %v654 = vpop.f32.mrf.mxu0
        %v655 = vadd.f32 0.0, %v654
        %v656 = vpop.f32.mrf.mxu0
        %v657 = vadd.f32 0.0, %v656
        %658 = vmatmul.bf16.gmra.mxu0 %v357
        %v659 = vpop.f32.mrf.mxu0
        %v660 = vadd.f32 0.0, %v659
        %v661 = vpop.f32.mrf.mxu0
        %v662 = vadd.f32 0.0, %v661
        %663 = vmatmul.bf16.gmra.mxu0 %v358
        %v664 = vpop.f32.mrf.mxu0
        %v665 = vadd.f32 0.0, %v664
        %v666 = vpop.f32.mrf.mxu0
        %v667 = vadd.f32 0.0, %v666
        %668 = vmatmul.bf16.gmra.mxu0 %v359
        %v669 = vpop.f32.mrf.mxu0
        %v670 = vadd.f32 0.0, %v669
        %v671 = vpop.f32.mrf.mxu0
        %v672 = vadd.f32 0.0, %v671
        %673 = vmatmul.bf16.gmra.mxu0 %v360
        %v674 = vpop.f32.mrf.mxu0
        %v675 = vadd.f32 0.0, %v674
        %v676 = vpop.f32.mrf.mxu0
        %v677 = vadd.f32 0.0, %v676
        %678 = vmatmul.bf16.gmra.mxu0 %v361
        %v679 = vpop.f32.mrf.mxu0
        %v680 = vadd.f32 0.0, %v679
        %v681 = vpop.f32.mrf.mxu0
        %v682 = vadd.f32 0.0, %v681
        %683 = vmatmul.bf16.gmra.mxu0 %v362
        %v684 = vpop.f32.mrf.mxu0
        %v685 = vadd.f32 0.0, %v684
        %v686 = vpop.f32.mrf.mxu0
        %v687 = vadd.f32 0.0, %v686
        %688 = vmatmul.bf16.gmra.mxu0 %v363
        %v689 = vpop.f32.mrf.mxu0
        %v690 = vadd.f32 0.0, %v689
        %v691 = vpop.f32.mrf.mxu0
        %v692 = vadd.f32 0.0, %v691
        %693 = vmatmul.bf16.gmra.mxu0 %v364
        %v694 = vpop.f32.mrf.mxu0
        %v695 = vadd.f32 0.0, %v694
        %v696 = vpop.f32.mrf.mxu0
        %v697 = vadd.f32 0.0, %v696
        %698 = vmatmul.bf16.gmra.mxu0 %v365
        %v699 = vpop.f32.mrf.mxu0
        %v700 = vadd.f32 0.0, %v699
        %v701 = vpop.f32.mrf.mxu0
        %v702 = vadd.f32 0.0, %v701
        %703 = vmatmul.bf16.gmra.mxu0 %v366
        %v704 = vpop.f32.mrf.mxu0
        %v705 = vadd.f32 0.0, %v704
        %v706 = vpop.f32.mrf.mxu0
        %v707 = vadd.f32 0.0, %v706
        %708 = vmatmul.bf16.gmra.mxu0 %v367
        %v709 = vpop.f32.mrf.mxu0
        %v710 = vadd.f32 0.0, %v709
        %v711 = vpop.f32.mrf.mxu0
        %v712 = vadd.f32 0.0, %v711
        %713 = vmatmul.bf16.gmra.mxu0 %v368
        %v714 = vpop.f32.mrf.mxu0
        %v715 = vadd.f32 0.0, %v714
        %v716 = vpop.f32.mrf.mxu0
        %v717 = vadd.f32 0.0, %v716
        %718 = vmatmul.bf16.gmra.mxu0 %v369
        %v719 = vpop.f32.mrf.mxu0
        %v720 = vadd.f32 0.0, %v719
        %v721 = vpop.f32.mrf.mxu0
        %v722 = vadd.f32 0.0, %v721
        %723 = vdwg.mxu0
        %724 = vmatpush.bf16.msra.mxu0 %v512
        %725 = vmatpush.bf16.msra.mxu0 %v508
        %726 = vmatpush.bf16.msra.mxu0 %v504
        %727 = vmatpush.bf16.msra.mxu0 %v500
        %728 = vmatpush.bf16.msra.mxu0 %v496
        %729 = vmatpush.bf16.msra.mxu0 %v492
        %730 = vmatpush.bf16.msra.mxu0 %v488
        %731 = vmatpush.bf16.msra.mxu0 %v484
        %732 = vmatmul.bf16.gmra.mxu0 %v354
        %v733 = vpop.f32.mrf.mxu0
        %v734 = vadd.f32 0.0, %v733
        %v735 = vpop.f32.mrf.mxu0
        %v736 = vadd.f32 0.0, %v735
        %737 = vmatmul.bf16.gmra.mxu0 %v355
        %v738 = vpop.f32.mrf.mxu0
        %v739 = vadd.f32 0.0, %v738
        %v740 = vpop.f32.mrf.mxu0
        %v741 = vadd.f32 0.0, %v740
        %742 = vmatmul.bf16.gmra.mxu0 %v356
        %v743 = vpop.f32.mrf.mxu0
        %v744 = vadd.f32 0.0, %v743
        %v745 = vpop.f32.mrf.mxu0
        %v746 = vadd.f32 0.0, %v745
        %747 = vmatmul.bf16.gmra.mxu0 %v357
        %v748 = vpop.f32.mrf.mxu0
        %v749 = vadd.f32 0.0, %v748
        %v750 = vpop.f32.mrf.mxu0
        %v751 = vadd.f32 0.0, %v750
        %752 = vmatmul.bf16.gmra.mxu0 %v358
        %v753 = vpop.f32.mrf.mxu0
        %v754 = vadd.f32 0.0, %v753
        %v755 = vpop.f32.mrf.mxu0
        %v756 = vadd.f32 0.0, %v755
        %757 = vmatmul.bf16.gmra.mxu0 %v359
        %v758 = vpop.f32.mrf.mxu0
        %v759 = vadd.f32 0.0, %v758
        %v760 = vpop.f32.mrf.mxu0
        %v761 = vadd.f32 0.0, %v760
        %762 = vmatmul.bf16.gmra.mxu0 %v360
        %v763 = vpop.f32.mrf.mxu0
        %v764 = vadd.f32 0.0, %v763
        %v765 = vpop.f32.mrf.mxu0
        %v766 = vadd.f32 0.0, %v765
        %767 = vmatmul.bf16.gmra.mxu0 %v361
        %v768 = vpop.f32.mrf.mxu0
        %v769 = vadd.f32 0.0, %v768
        %v770 = vpop.f32.mrf.mxu0
        %v771 = vadd.f32 0.0, %v770
        %772 = vmatmul.bf16.gmra.mxu0 %v362
        %v773 = vpop.f32.mrf.mxu0
        %v774 = vadd.f32 0.0, %v773
        %v775 = vpop.f32.mrf.mxu0
        %v776 = vadd.f32 0.0, %v775
        %777 = vmatmul.bf16.gmra.mxu0 %v363
        %v778 = vpop.f32.mrf.mxu0
        %v779 = vadd.f32 0.0, %v778
        %v780 = vpop.f32.mrf.mxu0
        %v781 = vadd.f32 0.0, %v780
        %782 = vmatmul.bf16.gmra.mxu0 %v364
        %v783 = vpop.f32.mrf.mxu0
        %v784 = vadd.f32 0.0, %v783
        %v785 = vpop.f32.mrf.mxu0
        %v786 = vadd.f32 0.0, %v785
        %787 = vmatmul.bf16.gmra.mxu0 %v365
        %v788 = vpop.f32.mrf.mxu0
        %v789 = vadd.f32 0.0, %v788
        %v790 = vpop.f32.mrf.mxu0
        %v791 = vadd.f32 0.0, %v790
        %792 = vmatmul.bf16.gmra.mxu0 %v366
        %v793 = vpop.f32.mrf.mxu0
        %v794 = vadd.f32 0.0, %v793
        %v795 = vpop.f32.mrf.mxu0
        %v796 = vadd.f32 0.0, %v795
        %797 = vmatmul.bf16.gmra.mxu0 %v367
        %v798 = vpop.f32.mrf.mxu0
        %v799 = vadd.f32 0.0, %v798
        %v800 = vpop.f32.mrf.mxu0
        %v801 = vadd.f32 0.0, %v800
        %802 = vmatmul.bf16.gmra.mxu0 %v368
        %v803 = vpop.f32.mrf.mxu0
        %v804 = vadd.f32 0.0, %v803
        %v805 = vpop.f32.mrf.mxu0
        %v806 = vadd.f32 0.0, %v805
        %807 = vmatmul.bf16.gmra.mxu0 %v369
        %v808 = vpop.f32.mrf.mxu0
        %v809 = vadd.f32 0.0, %v808
        %v810 = vpop.f32.mrf.mxu0
        %v811 = vadd.f32 0.0, %v810
        %812 = vdwg.mxu0
        %813 = vmatpush.bf16.msra.mxu0 %v513
        %814 = vmatpush.bf16.msra.mxu0 %v509
        %815 = vmatpush.bf16.msra.mxu0 %v505
        %816 = vmatpush.bf16.msra.mxu0 %v501
        %817 = vmatpush.bf16.msra.mxu0 %v497
        %818 = vmatpush.bf16.msra.mxu0 %v493
        %819 = vmatpush.bf16.msra.mxu0 %v489
        %820 = vmatpush.bf16.msra.mxu0 %v485
        %821 = vmatmul.bf16.gmra.mxu0 %v354
        %v822 = vpop.f32.mrf.mxu0
        %v823 = vadd.f32 0.0, %v822
        %v824 = vpop.f32.mrf.mxu0
        %v825 = vadd.f32 0.0, %v824
        %826 = vmatmul.bf16.gmra.mxu0 %v355
        %v827 = vpop.f32.mrf.mxu0
        %v828 = vadd.f32 0.0, %v827
        %v829 = vpop.f32.mrf.mxu0
        %v830 = vadd.f32 0.0, %v829
        %831 = vmatmul.bf16.gmra.mxu0 %v356
        %v832 = vpop.f32.mrf.mxu0
        %v833 = vadd.f32 0.0, %v832
        %v834 = vpop.f32.mrf.mxu0
        %v835 = vadd.f32 0.0, %v834
        %836 = vmatmul.bf16.gmra.mxu0 %v357
        %v837 = vpop.f32.mrf.mxu0
        %v838 = vadd.f32 0.0, %v837
        %v839 = vpop.f32.mrf.mxu0
        %v840 = vadd.f32 0.0, %v839
        %841 = vmatmul.bf16.gmra.mxu0 %v358
        %v842 = vpop.f32.mrf.mxu0
        %v843 = vadd.f32 0.0, %v842
        %v844 = vpop.f32.mrf.mxu0
        %v845 = vadd.f32 0.0, %v844
        %846 = vmatmul.bf16.gmra.mxu0 %v359
        %v847 = vpop.f32.mrf.mxu0
        %v848 = vadd.f32 0.0, %v847
        %v849 = vpop.f32.mrf.mxu0
        %v850 = vadd.f32 0.0, %v849
        %851 = vmatmul.bf16.gmra.mxu0 %v360
        %v852 = vpop.f32.mrf.mxu0
        %v853 = vadd.f32 0.0, %v852
        %v854 = vpop.f32.mrf.mxu0
        %v855 = vadd.f32 0.0, %v854
        %856 = vmatmul.bf16.gmra.mxu0 %v361
        %v857 = vpop.f32.mrf.mxu0
        %v858 = vadd.f32 0.0, %v857
        %v859 = vpop.f32.mrf.mxu0
        %v860 = vadd.f32 0.0, %v859
        %861 = vmatmul.bf16.gmra.mxu0 %v362
        %v862 = vpop.f32.mrf.mxu0
        %v863 = vadd.f32 0.0, %v862
        %v864 = vpop.f32.mrf.mxu0
        %v865 = vadd.f32 0.0, %v864
        %866 = vmatmul.bf16.gmra.mxu0 %v363
        %v867 = vpop.f32.mrf.mxu0
        %v868 = vadd.f32 0.0, %v867
        %v869 = vpop.f32.mrf.mxu0
        %v870 = vadd.f32 0.0, %v869
        %871 = vmatmul.bf16.gmra.mxu0 %v364
        %v872 = vpop.f32.mrf.mxu0
        %v873 = vadd.f32 0.0, %v872
        %v874 = vpop.f32.mrf.mxu0
        %v875 = vadd.f32 0.0, %v874
        %876 = vmatmul.bf16.gmra.mxu0 %v365
        %v877 = vpop.f32.mrf.mxu0
        %v878 = vadd.f32 0.0, %v877
        %v879 = vpop.f32.mrf.mxu0
        %v880 = vadd.f32 0.0, %v879
        %881 = vmatmul.bf16.gmra.mxu0 %v366
        %v882 = vpop.f32.mrf.mxu0
        %v883 = vadd.f32 0.0, %v882
        %v884 = vpop.f32.mrf.mxu0
        %v885 = vadd.f32 0.0, %v884
        %886 = vmatmul.bf16.gmra.mxu0 %v367
        %v887 = vpop.f32.mrf.mxu0
        %v888 = vadd.f32 0.0, %v887
        %v889 = vpop.f32.mrf.mxu0
        %v890 = vadd.f32 0.0, %v889
        %891 = vmatmul.bf16.gmra.mxu0 %v368
        %v892 = vpop.f32.mrf.mxu0
        %v893 = vadd.f32 0.0, %v892
        %v894 = vpop.f32.mrf.mxu0
        %v895 = vadd.f32 0.0, %v894
        %896 = vmatmul.bf16.gmra.mxu0 %v369
        %v897 = vpop.f32.mrf.mxu0
        %v898 = vadd.f32 0.0, %v897
        %v899 = vpop.f32.mrf.mxu0
        %v900 = vadd.f32 0.0, %v899
        %901 = vdwg.mxu0
        %v902 = vmul.f32 %v556, 0.5
        %v903 = vmul.f32 %v645, 0.5
        %v904 = vmul.f32 %v558, 0.5
        %v905 = vmul.f32 %v647, 0.5
        %v906 = vmul.f32 %v561, 0.5
        %v907 = vmul.f32 %v650, 0.5
        %v908 = vmul.f32 %v563, 0.5
        %v909 = vmul.f32 %v652, 0.5
        %v910 = vmul.f32 %v566, 0.5
        %v911 = vmul.f32 %v655, 0.5
        %v912 = vmul.f32 %v568, 0.5
        %v913 = vmul.f32 %v657, 0.5
        %v914 = vmul.f32 %v571, 0.5
        %v915 = vmul.f32 %v660, 0.5
        %v916 = vmul.f32 %v573, 0.5
        %v917 = vmul.f32 %v662, 0.5
        %v918 = vmul.f32 %v576, 0.5
        %v919 = vmul.f32 %v665, 0.5
        %v920 = vmul.f32 %v578, 0.5
        %v921 = vmul.f32 %v667, 0.5
        %v922 = vmul.f32 %v581, 0.5
        %v923 = vmul.f32 %v670, 0.5
        %v924 = vmul.f32 %v583, 0.5
        %v925 = vmul.f32 %v672, 0.5
        %v926 = vmul.f32 %v586, 0.5
        %v927 = vmul.f32 %v675, 0.5
        %v928 = vmul.f32 %v588, 0.5
        %v929 = vmul.f32 %v677, 0.5
        %v930 = vmul.f32 %v591, 0.5
        %v931 = vmul.f32 %v680, 0.5
        %v932 = vmul.f32 %v593, 0.5
        %v933 = vmul.f32 %v682, 0.5
        %v934 = vmul.f32 %v596, 0.5
        %v935 = vmul.f32 %v685, 0.5
        %v936 = vmul.f32 %v598, 0.5
        %v937 = vmul.f32 %v687, 0.5
        %v938 = vmul.f32 %v601, 0.5
        %v939 = vmul.f32 %v690, 0.5
        %v940 = vmul.f32 %v603, 0.5
        %v941 = vmul.f32 %v692, 0.5
        %v942 = vmul.f32 %v606, 0.5
        %v943 = vmul.f32 %v695, 0.5
        %v944 = vmul.f32 %v608, 0.5
        %v945 = vmul.f32 %v697, 0.5
        %v946 = vmul.f32 %v611, 0.5
        %v947 = vmul.f32 %v700, 0.5
        %v948 = vmul.f32 %v613, 0.5
        %v949 = vmul.f32 %v702, 0.5
        %v950 = vmul.f32 %v616, 0.5
        %v951 = vmul.f32 %v705, 0.5
        %v952 = vmul.f32 %v618, 0.5
        %v953 = vmul.f32 %v707, 0.5
        %v954 = vmul.f32 %v621, 0.5
        %v955 = vmul.f32 %v710, 0.5
        %v956 = vmul.f32 %v623, 0.5
        %v957 = vmul.f32 %v712, 0.5
        %v958 = vmul.f32 %v626, 0.5
        %v959 = vmul.f32 %v715, 0.5
        %v960 = vmul.f32 %v628, 0.5
        %v961 = vmul.f32 %v717, 0.5
        %v962 = vmul.f32 %v631, 0.5
        %v963 = vmul.f32 %v720, 0.5
        %v964 = vmul.f32 %v633, 0.5
        %v965 = vmul.f32 %v722, 0.5
        %v966 = vtanh.pop %v902
        %v967 = vtanh.pop %v903
        %v968 = vtanh.pop %v904
        %v969 = vtanh.pop %v905
        %v970 = vtanh.pop %v906
        %v971 = vtanh.pop %v907
        %v972 = vtanh.pop %v908
        %v973 = vtanh.pop %v909
        %v974 = vtanh.pop %v910
        %v975 = vtanh.pop %v911
        %v976 = vtanh.pop %v912
        %v977 = vtanh.pop %v913
        %v978 = vtanh.pop %v914
        %v979 = vtanh.pop %v915
        %v980 = vtanh.pop %v916
        %v981 = vtanh.pop %v917
        %v982 = vtanh.pop %v918
        %v983 = vtanh.pop %v919
        %v984 = vtanh.pop %v920
        %v985 = vtanh.pop %v921
        %v986 = vtanh.pop %v922
        %v987 = vtanh.pop %v923
        %v988 = vtanh.pop %v924
        %v989 = vtanh.pop %v925
        %v990 = vtanh.pop %v926
        %v991 = vtanh.pop %v927
        %v992 = vtanh.pop %v928
        %v993 = vtanh.pop %v929
        %v994 = vtanh.pop %v930
        %v995 = vtanh.pop %v931
        %v996 = vtanh.pop %v932
        %v997 = vtanh.pop %v933
        %v998 = vtanh.pop %v934
        %v999 = vtanh.pop %v935
        %v1000 = vtanh.pop %v936
        %v1001 = vtanh.pop %v937
        %v1002 = vtanh.pop %v938
        %v1003 = vtanh.pop %v939
        %v1004 = vtanh.pop %v940
        %v1005 = vtanh.pop %v941
        %v1006 = vtanh.pop %v942
        %v1007 = vtanh.pop %v943
        %v1008 = vtanh.pop %v944
        %v1009 = vtanh.pop %v945
        %v1010 = vtanh.pop %v946
        %v1011 = vtanh.pop %v947
        %v1012 = vtanh.pop %v948
        %v1013 = vtanh.pop %v949
        %v1014 = vtanh.pop %v950
        %v1015 = vtanh.pop %v951
        %v1016 = vtanh.pop %v952
        %v1017 = vtanh.pop %v953
        %v1018 = vtanh.pop %v954
        %v1019 = vtanh.pop %v955
        %v1020 = vtanh.pop %v956
        %v1021 = vtanh.pop %v957
        %v1022 = vtanh.pop %v958
        %v1023 = vtanh.pop %v959
        %v1024 = vtanh.pop %v960
        %v1025 = vtanh.pop %v961
        %v1026 = vtanh.pop %v962
        %v1027 = vtanh.pop %v963
        %v1028 = vtanh.pop %v964
        %v1029 = vtanh.pop %v965
        %v1030 = vadd.f32 %v966, 1.0
        %v1031 = vadd.f32 %v967, 1.0
        %v1032 = vadd.f32 %v968, 1.0
        %v1033 = vadd.f32 %v969, 1.0
        %v1034 = vadd.f32 %v970, 1.0
        %v1035 = vadd.f32 %v971, 1.0
        %v1036 = vadd.f32 %v972, 1.0
        %v1037 = vadd.f32 %v973, 1.0
        %v1038 = vadd.f32 %v974, 1.0
        %v1039 = vadd.f32 %v975, 1.0
        %v1040 = vadd.f32 %v976, 1.0
        %v1041 = vadd.f32 %v977, 1.0
        %v1042 = vadd.f32 %v978, 1.0
        %v1043 = vadd.f32 %v979, 1.0
        %v1044 = vadd.f32 %v980, 1.0
        %v1045 = vadd.f32 %v981, 1.0
        %v1046 = vadd.f32 %v982, 1.0
        %v1047 = vadd.f32 %v983, 1.0
        %v1048 = vadd.f32 %v984, 1.0
        %v1049 = vadd.f32 %v985, 1.0
        %v1050 = vadd.f32 %v986, 1.0
        %v1051 = vadd.f32 %v987, 1.0
        %v1052 = vadd.f32 %v988, 1.0
        %v1053 = vadd.f32 %v989, 1.0
        %v1054 = vadd.f32 %v990, 1.0
        %v1055 = vadd.f32 %v991, 1.0
        %v1056 = vadd.f32 %v992, 1.0
        %v1057 = vadd.f32 %v993, 1.0
        %v1058 = vadd.f32 %v994, 1.0
        %v1059 = vadd.f32 %v995, 1.0
        %v1060 = vadd.f32 %v996, 1.0
        %v1061 = vadd.f32 %v997, 1.0
        %v1062 = vadd.f32 %v998, 1.0
        %v1063 = vadd.f32 %v999, 1.0
        %v1064 = vadd.f32 %v1000, 1.0
        %v1065 = vadd.f32 %v1001, 1.0
        %v1066 = vadd.f32 %v1002, 1.0
        %v1067 = vadd.f32 %v1003, 1.0
        %v1068 = vadd.f32 %v1004, 1.0
        %v1069 = vadd.f32 %v1005, 1.0
        %v1070 = vadd.f32 %v1006, 1.0
        %v1071 = vadd.f32 %v1007, 1.0
        %v1072 = vadd.f32 %v1008, 1.0
        %v1073 = vadd.f32 %v1009, 1.0
        %v1074 = vadd.f32 %v1010, 1.0
        %v1075 = vadd.f32 %v1011, 1.0
        %v1076 = vadd.f32 %v1012, 1.0
        %v1077 = vadd.f32 %v1013, 1.0
        %v1078 = vadd.f32 %v1014, 1.0
        %v1079 = vadd.f32 %v1015, 1.0
        %v1080 = vadd.f32 %v1016, 1.0
        %v1081 = vadd.f32 %v1017, 1.0
        %v1082 = vadd.f32 %v1018, 1.0
        %v1083 = vadd.f32 %v1019, 1.0
        %v1084 = vadd.f32 %v1020, 1.0
        %v1085 = vadd.f32 %v1021, 1.0
        %v1086 = vadd.f32 %v1022, 1.0
        %v1087 = vadd.f32 %v1023, 1.0
        %v1088 = vadd.f32 %v1024, 1.0
        %v1089 = vadd.f32 %v1025, 1.0
        %v1090 = vadd.f32 %v1026, 1.0
        %v1091 = vadd.f32 %v1027, 1.0
        %v1092 = vadd.f32 %v1028, 1.0
        %v1093 = vadd.f32 %v1029, 1.0
        %v1094 = vmul.f32 %v1030, 0.5
        %v1095 = vmul.f32 %v1031, 0.5
        %v1096 = vmul.f32 %v1032, 0.5
        %v1097 = vmul.f32 %v1033, 0.5
        %v1098 = vmul.f32 %v1034, 0.5
        %v1099 = vmul.f32 %v1035, 0.5
        %v1100 = vmul.f32 %v1036, 0.5
        %v1101 = vmul.f32 %v1037, 0.5
        %v1102 = vmul.f32 %v1038, 0.5
        %v1103 = vmul.f32 %v1039, 0.5
        %v1104 = vmul.f32 %v1040, 0.5
        %v1105 = vmul.f32 %v1041, 0.5
        %v1106 = vmul.f32 %v1042, 0.5
        %v1107 = vmul.f32 %v1043, 0.5
        %v1108 = vmul.f32 %v1044, 0.5
        %v1109 = vmul.f32 %v1045, 0.5
        %v1110 = vmul.f32 %v1046, 0.5
        %v1111 = vmul.f32 %v1047, 0.5
        %v1112 = vmul.f32 %v1048, 0.5
        %v1113 = vmul.f32 %v1049, 0.5
        %v1114 = vmul.f32 %v1050, 0.5
        %v1115 = vmul.f32 %v1051, 0.5
        %v1116 = vmul.f32 %v1052, 0.5
        %v1117 = vmul.f32 %v1053, 0.5
        %v1118 = vmul.f32 %v1054, 0.5
        %v1119 = vmul.f32 %v1055, 0.5
        %v1120 = vmul.f32 %v1056, 0.5
        %v1121 = vmul.f32 %v1057, 0.5
        %v1122 = vmul.f32 %v1058, 0.5
        %v1123 = vmul.f32 %v1059, 0.5
        %v1124 = vmul.f32 %v1060, 0.5
        %v1125 = vmul.f32 %v1061, 0.5
        %v1126 = vmul.f32 %v1062, 0.5
        %v1127 = vmul.f32 %v1063, 0.5
        %v1128 = vmul.f32 %v1064, 0.5
        %v1129 = vmul.f32 %v1065, 0.5
        %v1130 = vmul.f32 %v1066, 0.5
        %v1131 = vmul.f32 %v1067, 0.5
        %v1132 = vmul.f32 %v1068, 0.5
        %v1133 = vmul.f32 %v1069, 0.5
        %v1134 = vmul.f32 %v1070, 0.5
        %v1135 = vmul.f32 %v1071, 0.5
        %v1136 = vmul.f32 %v1072, 0.5
        %v1137 = vmul.f32 %v1073, 0.5
        %v1138 = vmul.f32 %v1074, 0.5
        %v1139 = vmul.f32 %v1075, 0.5
        %v1140 = vmul.f32 %v1076, 0.5
        %v1141 = vmul.f32 %v1077, 0.5
        %v1142 = vmul.f32 %v1078, 0.5
        %v1143 = vmul.f32 %v1079, 0.5
        %v1144 = vmul.f32 %v1080, 0.5
        %v1145 = vmul.f32 %v1081, 0.5
        %v1146 = vmul.f32 %v1082, 0.5
        %v1147 = vmul.f32 %v1083, 0.5
        %v1148 = vmul.f32 %v1084, 0.5
        %v1149 = vmul.f32 %v1085, 0.5
        %v1150 = vmul.f32 %v1086, 0.5
        %v1151 = vmul.f32 %v1087, 0.5
        %v1152 = vmul.f32 %v1088, 0.5
        %v1153 = vmul.f32 %v1089, 0.5
        %v1154 = vmul.f32 %v1090, 0.5
        %v1155 = vmul.f32 %v1091, 0.5
        %v1156 = vmul.f32 %v1092, 0.5
        %v1157 = vmul.f32 %v1093, 0.5
        %v1158 = vmul.f32 %v556, %v1094
        %v1159 = vmul.f32 %v645, %v1095
        %v1160 = vmul.f32 %v558, %v1096
        %v1161 = vmul.f32 %v647, %v1097
        %v1162 = vmul.f32 %v561, %v1098
        %v1163 = vmul.f32 %v650, %v1099
        %v1164 = vmul.f32 %v563, %v1100
        %v1165 = vmul.f32 %v652, %v1101
        %v1166 = vmul.f32 %v566, %v1102
        %v1167 = vmul.f32 %v655, %v1103
        %v1168 = vmul.f32 %v568, %v1104
        %v1169 = vmul.f32 %v657, %v1105
        %v1170 = vmul.f32 %v571, %v1106
        %v1171 = vmul.f32 %v660, %v1107
        %v1172 = vmul.f32 %v573, %v1108
        %v1173 = vmul.f32 %v662, %v1109
        %v1174 = vmul.f32 %v576, %v1110
        %v1175 = vmul.f32 %v665, %v1111
        %v1176 = vmul.f32 %v578, %v1112
        %v1177 = vmul.f32 %v667, %v1113
        %v1178 = vmul.f32 %v581, %v1114
        %v1179 = vmul.f32 %v670, %v1115
        %v1180 = vmul.f32 %v583, %v1116
        %v1181 = vmul.f32 %v672, %v1117
        %v1182 = vmul.f32 %v586, %v1118
        %v1183 = vmul.f32 %v675, %v1119
        %v1184 = vmul.f32 %v588, %v1120
        %v1185 = vmul.f32 %v677, %v1121
        %v1186 = vmul.f32 %v591, %v1122
        %v1187 = vmul.f32 %v680, %v1123
        %v1188 = vmul.f32 %v593, %v1124
        %v1189 = vmul.f32 %v682, %v1125
        %v1190 = vmul.f32 %v596, %v1126
        %v1191 = vmul.f32 %v685, %v1127
        %v1192 = vmul.f32 %v598, %v1128
        %v1193 = vmul.f32 %v687, %v1129
        %v1194 = vmul.f32 %v601, %v1130
        %v1195 = vmul.f32 %v690, %v1131
        %v1196 = vmul.f32 %v603, %v1132
        %v1197 = vmul.f32 %v692, %v1133
        %v1198 = vmul.f32 %v606, %v1134
        %v1199 = vmul.f32 %v695, %v1135
        %v1200 = vmul.f32 %v608, %v1136
        %v1201 = vmul.f32 %v697, %v1137
        %v1202 = vmul.f32 %v611, %v1138
        %v1203 = vmul.f32 %v700, %v1139
        %v1204 = vmul.f32 %v613, %v1140
        %v1205 = vmul.f32 %v702, %v1141
        %v1206 = vmul.f32 %v616, %v1142
        %v1207 = vmul.f32 %v705, %v1143
        %v1208 = vmul.f32 %v618, %v1144
        %v1209 = vmul.f32 %v707, %v1145
        %v1210 = vmul.f32 %v621, %v1146
        %v1211 = vmul.f32 %v710, %v1147
        %v1212 = vmul.f32 %v623, %v1148
        %v1213 = vmul.f32 %v712, %v1149
        %v1214 = vmul.f32 %v626, %v1150
        %v1215 = vmul.f32 %v715, %v1151
        %v1216 = vmul.f32 %v628, %v1152
        %v1217 = vmul.f32 %v717, %v1153
        %v1218 = vmul.f32 %v631, %v1154
        %v1219 = vmul.f32 %v720, %v1155
        %v1220 = vmul.f32 %v633, %v1156
        %v1221 = vmul.f32 %v722, %v1157
        %v1222 = vmul.f32 %v1158, %v734
        %v1223 = vmul.f32 %v1159, %v823
        %v1224 = vmul.f32 %v1160, %v736
        %v1225 = vmul.f32 %v1161, %v825
        %v1226 = vmul.f32 %v1162, %v739
        %v1227 = vmul.f32 %v1163, %v828
        %v1228 = vmul.f32 %v1164, %v741
        %v1229 = vmul.f32 %v1165, %v830
        %v1230 = vmul.f32 %v1166, %v744
        %v1231 = vmul.f32 %v1167, %v833
        %v1232 = vmul.f32 %v1168, %v746
        %v1233 = vmul.f32 %v1169, %v835
        %v1234 = vmul.f32 %v1170, %v749
        %v1235 = vmul.f32 %v1171, %v838
        %v1236 = vmul.f32 %v1172, %v751
        %v1237 = vmul.f32 %v1173, %v840
        %v1238 = vmul.f32 %v1174, %v754
        %v1239 = vmul.f32 %v1175, %v843
        %v1240 = vmul.f32 %v1176, %v756
        %v1241 = vmul.f32 %v1177, %v845
        %v1242 = vmul.f32 %v1178, %v759
        %v1243 = vmul.f32 %v1179, %v848
        %v1244 = vmul.f32 %v1180, %v761
        %v1245 = vmul.f32 %v1181, %v850
        %v1246 = vmul.f32 %v1182, %v764
        %v1247 = vmul.f32 %v1183, %v853
        %v1248 = vmul.f32 %v1184, %v766
        %v1249 = vmul.f32 %v1185, %v855
        %v1250 = vmul.f32 %v1186, %v769
        %v1251 = vmul.f32 %v1187, %v858
        %v1252 = vmul.f32 %v1188, %v771
        %v1253 = vmul.f32 %v1189, %v860
        %v1254 = vmul.f32 %v1190, %v774
        %v1255 = vmul.f32 %v1191, %v863
        %v1256 = vmul.f32 %v1192, %v776
        %v1257 = vmul.f32 %v1193, %v865
        %v1258 = vmul.f32 %v1194, %v779
        %v1259 = vmul.f32 %v1195, %v868
        %v1260 = vmul.f32 %v1196, %v781
        %v1261 = vmul.f32 %v1197, %v870
        %v1262 = vmul.f32 %v1198, %v784
        %v1263 = vmul.f32 %v1199, %v873
        %v1264 = vmul.f32 %v1200, %v786
        %v1265 = vmul.f32 %v1201, %v875
        %v1266 = vmul.f32 %v1202, %v789
        %v1267 = vmul.f32 %v1203, %v878
        %v1268 = vmul.f32 %v1204, %v791
        %v1269 = vmul.f32 %v1205, %v880
        %v1270 = vmul.f32 %v1206, %v794
        %v1271 = vmul.f32 %v1207, %v883
        %v1272 = vmul.f32 %v1208, %v796
        %v1273 = vmul.f32 %v1209, %v885
        %v1274 = vmul.f32 %v1210, %v799
        %v1275 = vmul.f32 %v1211, %v888
        %v1276 = vmul.f32 %v1212, %v801
        %v1277 = vmul.f32 %v1213, %v890
        %v1278 = vmul.f32 %v1214, %v804
        %v1279 = vmul.f32 %v1215, %v893
        %v1280 = vmul.f32 %v1216, %v806
        %v1281 = vmul.f32 %v1217, %v895
        %v1282 = vmul.f32 %v1218, %v809
        %v1283 = vmul.f32 %v1219, %v898
        %v1284 = vmul.f32 %v1220, %v811
        %v1285 = vmul.f32 %v1221, %v900
        %v1286 = vpack.c.bf16 %v1224, %v1222
        %v1287 = vpack.c.bf16 %v1225, %v1223
        %v1288 = vpack.c.bf16 %v1228, %v1226
        %v1289 = vpack.c.bf16 %v1229, %v1227
        %v1290 = vpack.c.bf16 %v1232, %v1230
        %v1291 = vpack.c.bf16 %v1233, %v1231
        %v1292 = vpack.c.bf16 %v1236, %v1234
        %v1293 = vpack.c.bf16 %v1237, %v1235
        %v1294 = vpack.c.bf16 %v1240, %v1238
        %v1295 = vpack.c.bf16 %v1241, %v1239
        %v1296 = vpack.c.bf16 %v1244, %v1242
        %v1297 = vpack.c.bf16 %v1245, %v1243
        %v1298 = vpack.c.bf16 %v1248, %v1246
        %v1299 = vpack.c.bf16 %v1249, %v1247
        %v1300 = vpack.c.bf16 %v1252, %v1250
        %v1301 = vpack.c.bf16 %v1253, %v1251
        %v1302 = vpack.c.bf16 %v1256, %v1254
        %v1303 = vpack.c.bf16 %v1257, %v1255
        %v1304 = vpack.c.bf16 %v1260, %v1258
        %v1305 = vpack.c.bf16 %v1261, %v1259
        %v1306 = vpack.c.bf16 %v1264, %v1262
        %v1307 = vpack.c.bf16 %v1265, %v1263
        %v1308 = vpack.c.bf16 %v1268, %v1266
        %v1309 = vpack.c.bf16 %v1269, %v1267
        %v1310 = vpack.c.bf16 %v1272, %v1270
        %v1311 = vpack.c.bf16 %v1273, %v1271
        %v1312 = vpack.c.bf16 %v1276, %v1274
        %v1313 = vpack.c.bf16 %v1277, %v1275
        %v1314 = vpack.c.bf16 %v1280, %v1278
        %v1315 = vpack.c.bf16 %v1281, %v1279
        %v1316 = vpack.c.bf16 %v1284, %v1282
        %v1317 = vpack.c.bf16 %v1285, %v1283
        %v1318 = vld [vmem:[#allocation7] sm:$0xf]
        %v1319 = vld [vmem:[#allocation7 + $0x4] sm:$0xf]
        %v1320 = vld [vmem:[#allocation7 + $0x8] sm:$0xf]
        %v1321 = vld [vmem:[#allocation7 + $0xc] sm:$0xf]
        %v1322 = vld [vmem:[#allocation7 + $0x10] sm:$0xf]
        %v1323 = vld [vmem:[#allocation7 + $0x14] sm:$0xf]
        %v1324 = vld [vmem:[#allocation7 + $0x18] sm:$0xf]
        %v1325 = vld [vmem:[#allocation7 + $0x1c] sm:$0xf]
        %v1326 = vld [vmem:[#allocation7 + $0x20] sm:$0xf]
        %v1327 = vld [vmem:[#allocation7 + $0x24] sm:$0xf]
        %v1328 = vld [vmem:[#allocation7 + $0x28] sm:$0xf]
        %v1329 = vld [vmem:[#allocation7 + $0x2c] sm:$0xf]
        %v1330 = vld [vmem:[#allocation7 + $0x30] sm:$0xf]
        %v1331 = vld [vmem:[#allocation7 + $0x34] sm:$0xf]
        %v1332 = vld [vmem:[#allocation7 + $0x38] sm:$0xf]
        %v1333 = vld [vmem:[#allocation7 + $0x3c] sm:$0xf]
        %v1334 = vld [vmem:[#allocation7 + $0x40] sm:$0xf]
        %v1335 = vld [vmem:[#allocation7 + $0x44] sm:$0xf]
        %v1336 = vld [vmem:[#allocation7 + $0x48] sm:$0xf]
        %v1337 = vld [vmem:[#allocation7 + $0x4c] sm:$0xf]
        %v1338 = vld [vmem:[#allocation7 + $0x50] sm:$0xf]
        %v1339 = vld [vmem:[#allocation7 + $0x54] sm:$0xf]
        %v1340 = vld [vmem:[#allocation7 + $0x58] sm:$0xf]
        %v1341 = vld [vmem:[#allocation7 + $0x5c] sm:$0xf]
        %v1342 = vld [vmem:[#allocation7 + $0x60] sm:$0xf]
        %v1343 = vld [vmem:[#allocation7 + $0x64] sm:$0xf]
        %v1344 = vld [vmem:[#allocation7 + $0x68] sm:$0xf]
        %v1345 = vld [vmem:[#allocation7 + $0x6c] sm:$0xf]
        %v1346 = vld [vmem:[#allocation7 + $0x70] sm:$0xf]
        %v1347 = vld [vmem:[#allocation7 + $0x74] sm:$0xf]
        %v1348 = vld [vmem:[#allocation7 + $0x78] sm:$0xf]
        %v1349 = vld [vmem:[#allocation7 + $0x7c] sm:$0xf]
        %v1382 = vunpack.c.l.b16 %v1318
        %v1383 = vunpack.c.l.b16 %v1319
        %v1384 = vunpack.c.l.b16 %v1320
        %v1385 = vunpack.c.l.b16 %v1321
        %v1386 = vunpack.c.l.b16 %v1322
        %v1387 = vunpack.c.l.b16 %v1323
        %v1388 = vunpack.c.l.b16 %v1324
        %v1389 = vunpack.c.l.b16 %v1325
        %v1390 = vunpack.c.l.b16 %v1326
        %v1391 = vunpack.c.l.b16 %v1327
        %v1392 = vunpack.c.l.b16 %v1328
        %v1393 = vunpack.c.l.b16 %v1329
        %v1394 = vunpack.c.l.b16 %v1330
        %v1395 = vunpack.c.l.b16 %v1331
        %v1396 = vunpack.c.l.b16 %v1332
        %v1397 = vunpack.c.l.b16 %v1333
        %v1398 = vunpack.c.l.b16 %v1334
        %v1399 = vunpack.c.l.b16 %v1335
        %v1400 = vunpack.c.l.b16 %v1336
        %v1401 = vunpack.c.l.b16 %v1337
        %v1402 = vunpack.c.l.b16 %v1338
        %v1403 = vunpack.c.l.b16 %v1339
        %v1404 = vunpack.c.l.b16 %v1340
        %v1405 = vunpack.c.l.b16 %v1341
        %v1406 = vunpack.c.l.b16 %v1342
        %v1407 = vunpack.c.l.b16 %v1343
        %v1408 = vunpack.c.l.b16 %v1344
        %v1409 = vunpack.c.l.b16 %v1345
        %v1410 = vunpack.c.l.b16 %v1346
        %v1411 = vunpack.c.l.b16 %v1347
        %v1412 = vunpack.c.l.b16 %v1348
        %v1413 = vunpack.c.l.b16 %v1349
        %v1414 = vpack.c.b16 %v1383, %v1382
        %v1415 = vpack.c.b16 %v1385, %v1384
        %v1416 = vpack.c.b16 %v1387, %v1386
        %v1417 = vpack.c.b16 %v1389, %v1388
        %v1418 = vpack.c.b16 %v1391, %v1390
        %v1419 = vpack.c.b16 %v1393, %v1392
        %v1420 = vpack.c.b16 %v1395, %v1394
        %v1421 = vpack.c.b16 %v1397, %v1396
        %v1422 = vpack.c.b16 %v1399, %v1398
        %v1423 = vpack.c.b16 %v1401, %v1400
        %v1424 = vpack.c.b16 %v1403, %v1402
        %v1425 = vpack.c.b16 %v1405, %v1404
        %v1426 = vpack.c.b16 %v1407, %v1406
        %v1427 = vpack.c.b16 %v1409, %v1408
        %v1428 = vpack.c.b16 %v1411, %v1410
        %v1429 = vpack.c.b16 %v1413, %v1412
        %1446 = vmatpush.bf16.msra.mxu0 %v1421
        %1447 = vmatpush.bf16.msra.mxu0 %v1420
        %1448 = vmatpush.bf16.msra.mxu0 %v1419
        %1449 = vmatpush.bf16.msra.mxu0 %v1418
        %1450 = vmatpush.bf16.msra.mxu0 %v1417
        %1451 = vmatpush.bf16.msra.mxu0 %v1416
        %1452 = vmatpush.bf16.msra.mxu0 %v1415
        %1453 = vmatpush.bf16.msra.mxu0 %v1414
        %1454 = vmatmul.bf16.gmra.mxu0 %v1286
        %v1455 = vpop.f32.mrf.mxu0
        %v1456 = vadd.f32 0.0, %v1455
        %v1457 = vpop.f32.mrf.mxu0
        %v1458 = vadd.f32 0.0, %v1457
        %1459 = vmatmul.bf16.gmra.mxu0 %v1288
        %v1460 = vpop.f32.mrf.mxu0
        %v1461 = vadd.f32 0.0, %v1460
        %v1462 = vpop.f32.mrf.mxu0
        %v1463 = vadd.f32 0.0, %v1462
        %1464 = vmatmul.bf16.gmra.mxu0 %v1290
        %v1465 = vpop.f32.mrf.mxu0
        %v1466 = vadd.f32 0.0, %v1465
        %v1467 = vpop.f32.mrf.mxu0
        %v1468 = vadd.f32 0.0, %v1467
        %1469 = vmatmul.bf16.gmra.mxu0 %v1292
        %v1470 = vpop.f32.mrf.mxu0
        %v1471 = vadd.f32 0.0, %v1470
        %v1472 = vpop.f32.mrf.mxu0
        %v1473 = vadd.f32 0.0, %v1472
        %1474 = vmatmul.bf16.gmra.mxu0 %v1294
        %v1475 = vpop.f32.mrf.mxu0
        %v1476 = vadd.f32 0.0, %v1475
        %v1477 = vpop.f32.mrf.mxu0
        %v1478 = vadd.f32 0.0, %v1477
        %1479 = vmatmul.bf16.gmra.mxu0 %v1296
        %v1480 = vpop.f32.mrf.mxu0
        %v1481 = vadd.f32 0.0, %v1480
        %v1482 = vpop.f32.mrf.mxu0
        %v1483 = vadd.f32 0.0, %v1482
        %1484 = vmatmul.bf16.gmra.mxu0 %v1298
        %v1485 = vpop.f32.mrf.mxu0
        %v1486 = vadd.f32 0.0, %v1485
        %v1487 = vpop.f32.mrf.mxu0
        %v1488 = vadd.f32 0.0, %v1487
        %1489 = vmatmul.bf16.gmra.mxu0 %v1300
        %v1490 = vpop.f32.mrf.mxu0
        %v1491 = vadd.f32 0.0, %v1490
        %v1492 = vpop.f32.mrf.mxu0
        %v1493 = vadd.f32 0.0, %v1492
        %1494 = vmatmul.bf16.gmra.mxu0 %v1302
        %v1495 = vpop.f32.mrf.mxu0
        %v1496 = vadd.f32 0.0, %v1495
        %v1497 = vpop.f32.mrf.mxu0
        %v1498 = vadd.f32 0.0, %v1497
        %1499 = vmatmul.bf16.gmra.mxu0 %v1304
        %v1500 = vpop.f32.mrf.mxu0
        %v1501 = vadd.f32 0.0, %v1500
        %v1502 = vpop.f32.mrf.mxu0
        %v1503 = vadd.f32 0.0, %v1502
        %1504 = vmatmul.bf16.gmra.mxu0 %v1306
        %v1505 = vpop.f32.mrf.mxu0
        %v1506 = vadd.f32 0.0, %v1505
        %v1507 = vpop.f32.mrf.mxu0
        %v1508 = vadd.f32 0.0, %v1507
        %1509 = vmatmul.bf16.gmra.mxu0 %v1308
        %v1510 = vpop.f32.mrf.mxu0
        %v1511 = vadd.f32 0.0, %v1510
        %v1512 = vpop.f32.mrf.mxu0
        %v1513 = vadd.f32 0.0, %v1512
        %1514 = vmatmul.bf16.gmra.mxu0 %v1310
        %v1515 = vpop.f32.mrf.mxu0
        %v1516 = vadd.f32 0.0, %v1515
        %v1517 = vpop.f32.mrf.mxu0
        %v1518 = vadd.f32 0.0, %v1517
        %1519 = vmatmul.bf16.gmra.mxu0 %v1312
        %v1520 = vpop.f32.mrf.mxu0
        %v1521 = vadd.f32 0.0, %v1520
        %v1522 = vpop.f32.mrf.mxu0
        %v1523 = vadd.f32 0.0, %v1522
        %1524 = vmatmul.bf16.gmra.mxu0 %v1314
        %v1525 = vpop.f32.mrf.mxu0
        %v1526 = vadd.f32 0.0, %v1525
        %v1527 = vpop.f32.mrf.mxu0
        %v1528 = vadd.f32 0.0, %v1527
        %1529 = vmatmul.bf16.gmra.mxu0 %v1316
        %v1530 = vpop.f32.mrf.mxu0
        %v1531 = vadd.f32 0.0, %v1530
        %v1532 = vpop.f32.mrf.mxu0
        %v1533 = vadd.f32 0.0, %v1532
        %1534 = vdwg.mxu0
        %1535 = vmatpush.bf16.msra.mxu0 %v1429
        %1536 = vmatpush.bf16.msra.mxu0 %v1428
        %1537 = vmatpush.bf16.msra.mxu0 %v1427
        %1538 = vmatpush.bf16.msra.mxu0 %v1426
        %1539 = vmatpush.bf16.msra.mxu0 %v1425
        %1540 = vmatpush.bf16.msra.mxu0 %v1424
        %1541 = vmatpush.bf16.msra.mxu0 %v1423
        %1542 = vmatpush.bf16.msra.mxu0 %v1422
        %1543 = vmatmul.bf16.gmra.mxu0 %v1287
        %v1544 = vpop.f32.mrf.mxu0
        %v1545 = vadd.f32 %v1456, %v1544
        %v1546 = vpop.f32.mrf.mxu0
        %v1547 = vadd.f32 %v1458, %v1546
        %1548 = vmatmul.bf16.gmra.mxu0 %v1289
        %v1549 = vpop.f32.mrf.mxu0
        %v1550 = vadd.f32 %v1461, %v1549
        %v1551 = vpop.f32.mrf.mxu0
        %v1552 = vadd.f32 %v1463, %v1551
        %1553 = vmatmul.bf16.gmra.mxu0 %v1291
        %v1554 = vpop.f32.mrf.mxu0
        %v1555 = vadd.f32 %v1466, %v1554
        %v1556 = vpop.f32.mrf.mxu0
        %v1557 = vadd.f32 %v1468, %v1556
        %1558 = vmatmul.bf16.gmra.mxu0 %v1293
        %v1559 = vpop.f32.mrf.mxu0
        %v1560 = vadd.f32 %v1471, %v1559
        %v1561 = vpop.f32.mrf.mxu0
        %v1562 = vadd.f32 %v1473, %v1561
        %1563 = vmatmul.bf16.gmra.mxu0 %v1295
        %v1564 = vpop.f32.mrf.mxu0
        %v1565 = vadd.f32 %v1476, %v1564
        %v1566 = vpop.f32.mrf.mxu0
        %v1567 = vadd.f32 %v1478, %v1566
        %1568 = vmatmul.bf16.gmra.mxu0 %v1297
        %v1569 = vpop.f32.mrf.mxu0
        %v1570 = vadd.f32 %v1481, %v1569
        %v1571 = vpop.f32.mrf.mxu0
        %v1572 = vadd.f32 %v1483, %v1571
        %1573 = vmatmul.bf16.gmra.mxu0 %v1299
        %v1574 = vpop.f32.mrf.mxu0
        %v1575 = vadd.f32 %v1486, %v1574
        %v1576 = vpop.f32.mrf.mxu0
        %v1577 = vadd.f32 %v1488, %v1576
        %1578 = vmatmul.bf16.gmra.mxu0 %v1301
        %v1579 = vpop.f32.mrf.mxu0
        %v1580 = vadd.f32 %v1491, %v1579
        %v1581 = vpop.f32.mrf.mxu0
        %v1582 = vadd.f32 %v1493, %v1581
        %1583 = vmatmul.bf16.gmra.mxu0 %v1303
        %v1584 = vpop.f32.mrf.mxu0
        %v1585 = vadd.f32 %v1496, %v1584
        %v1586 = vpop.f32.mrf.mxu0
        %v1587 = vadd.f32 %v1498, %v1586
        %1588 = vmatmul.bf16.gmra.mxu0 %v1305
        %v1589 = vpop.f32.mrf.mxu0
        %v1590 = vadd.f32 %v1501, %v1589
        %v1591 = vpop.f32.mrf.mxu0
        %v1592 = vadd.f32 %v1503, %v1591
        %1593 = vmatmul.bf16.gmra.mxu0 %v1307
        %v1594 = vpop.f32.mrf.mxu0
        %v1595 = vadd.f32 %v1506, %v1594
        %v1596 = vpop.f32.mrf.mxu0
        %v1597 = vadd.f32 %v1508, %v1596
        %1598 = vmatmul.bf16.gmra.mxu0 %v1309
        %v1599 = vpop.f32.mrf.mxu0
        %v1600 = vadd.f32 %v1511, %v1599
        %v1601 = vpop.f32.mrf.mxu0
        %v1602 = vadd.f32 %v1513, %v1601
        %1603 = vmatmul.bf16.gmra.mxu0 %v1311
        %v1604 = vpop.f32.mrf.mxu0
        %v1605 = vadd.f32 %v1516, %v1604
        %v1606 = vpop.f32.mrf.mxu0
        %v1607 = vadd.f32 %v1518, %v1606
        %1608 = vmatmul.bf16.gmra.mxu0 %v1313
        %v1609 = vpop.f32.mrf.mxu0
        %v1610 = vadd.f32 %v1521, %v1609
        %v1611 = vpop.f32.mrf.mxu0
        %v1612 = vadd.f32 %v1523, %v1611
        %1613 = vmatmul.bf16.gmra.mxu0 %v1315
        %v1614 = vpop.f32.mrf.mxu0
        %v1615 = vadd.f32 %v1526, %v1614
        %v1616 = vpop.f32.mrf.mxu0
        %v1617 = vadd.f32 %v1528, %v1616
        %1618 = vmatmul.bf16.gmra.mxu0 %v1317
        %v1619 = vpop.f32.mrf.mxu0
        %v1620 = vadd.f32 %v1531, %v1619
        %v1621 = vpop.f32.mrf.mxu0
        %v1622 = vadd.f32 %v1533, %v1621
        %1623 = vdwg.mxu0
        %v1624 = vpack.c.bf16 %v1545, %v1545
        %v1625 = vpack.c.bf16 %v1547, %v1547
        %v1626 = vpack.c.bf16 %v1550, %v1550
        %v1627 = vpack.c.bf16 %v1552, %v1552
        %v1628 = vpack.c.bf16 %v1555, %v1555
        %v1629 = vpack.c.bf16 %v1557, %v1557
        %v1630 = vpack.c.bf16 %v1560, %v1560
        %v1631 = vpack.c.bf16 %v1562, %v1562
        %v1632 = vpack.c.bf16 %v1565, %v1565
        %v1633 = vpack.c.bf16 %v1567, %v1567
        %v1634 = vpack.c.bf16 %v1570, %v1570
        %v1635 = vpack.c.bf16 %v1572, %v1572
        %v1636 = vpack.c.bf16 %v1575, %v1575
        %v1637 = vpack.c.bf16 %v1577, %v1577
        %v1638 = vpack.c.bf16 %v1580, %v1580
        %v1639 = vpack.c.bf16 %v1582, %v1582
        %v1640 = vpack.c.bf16 %v1585, %v1585
        %v1641 = vpack.c.bf16 %v1587, %v1587
        %v1642 = vpack.c.bf16 %v1590, %v1590
        %v1643 = vpack.c.bf16 %v1592, %v1592
        %v1644 = vpack.c.bf16 %v1595, %v1595
        %v1645 = vpack.c.bf16 %v1597, %v1597
        %v1646 = vpack.c.bf16 %v1600, %v1600
        %v1647 = vpack.c.bf16 %v1602, %v1602
        %v1648 = vpack.c.bf16 %v1605, %v1605
        %v1649 = vpack.c.bf16 %v1607, %v1607
        %v1650 = vpack.c.bf16 %v1610, %v1610
        %v1651 = vpack.c.bf16 %v1612, %v1612
        %v1652 = vpack.c.bf16 %v1615, %v1615
        %v1653 = vpack.c.bf16 %v1617, %v1617
        %v1654 = vpack.c.bf16 %v1620, %v1620
        %v1655 = vpack.c.bf16 %v1622, %v1622
        %1656 = vst [vmem:[%s223] sm:$0xf] %v1624
        %1657 = vst [vmem:[%s223 + $0x4] sm:$0xf] %v1625
        %1658 = vst [vmem:[%s223 + $0x8] sm:$0xf] %v1626
        %1659 = vst [vmem:[%s223 + $0xc] sm:$0xf] %v1627
        %1660 = vst [vmem:[%s223 + $0x10] sm:$0xf] %v1628
        %1661 = vst [vmem:[%s223 + $0x14] sm:$0xf] %v1629
        %1662 = vst [vmem:[%s223 + $0x18] sm:$0xf] %v1630
        %1663 = vst [vmem:[%s223 + $0x1c] sm:$0xf] %v1631
        %1664 = vst [vmem:[%s223 + $0x20] sm:$0xf] %v1632
        %1665 = vst [vmem:[%s223 + $0x24] sm:$0xf] %v1633
        %1666 = vst [vmem:[%s223 + $0x28] sm:$0xf] %v1634
        %1667 = vst [vmem:[%s223 + $0x2c] sm:$0xf] %v1635
        %1668 = vst [vmem:[%s223 + $0x30] sm:$0xf] %v1636
        %1669 = vst [vmem:[%s223 + $0x34] sm:$0xf] %v1637
        %1670 = vst [vmem:[%s223 + $0x38] sm:$0xf] %v1638
        %1671 = vst [vmem:[%s223 + $0x3c] sm:$0xf] %v1639
        %1672 = vst [vmem:[%s223 + $0x40] sm:$0xf] %v1640
        %1673 = vst [vmem:[%s223 + $0x44] sm:$0xf] %v1641
        %1674 = vst [vmem:[%s223 + $0x48] sm:$0xf] %v1642
        %1675 = vst [vmem:[%s223 + $0x4c] sm:$0xf] %v1643
        %1676 = vst [vmem:[%s223 + $0x50] sm:$0xf] %v1644
        %1677 = vst [vmem:[%s223 + $0x54] sm:$0xf] %v1645
        %1678 = vst [vmem:[%s223 + $0x58] sm:$0xf] %v1646
        %1679 = vst [vmem:[%s223 + $0x5c] sm:$0xf] %v1647
        %1680 = vst [vmem:[%s223 + $0x60] sm:$0xf] %v1648
        %1681 = vst [vmem:[%s223 + $0x64] sm:$0xf] %v1649
        %1682 = vst [vmem:[%s223 + $0x68] sm:$0xf] %v1650
        %1683 = vst [vmem:[%s223 + $0x6c] sm:$0xf] %v1651
        %1684 = vst [vmem:[%s223 + $0x70] sm:$0xf] %v1652
        %1685 = vst [vmem:[%s223 + $0x74] sm:$0xf] %v1653
        %1686 = vst [vmem:[%s223 + $0x78] sm:$0xf] %v1654
        %1687 = vst [vmem:[%s223 + $0x7c] sm:$0xf] %v1655
        %s1688 = sand.u32 %s97, 1
        %s1689 = scalar_lea.sflag [#allocation4], %s1688
        %s1690 = sand.u32 %s97, 1
        %s1691 = smul.addr %s1690, 128
        %s1692 = scalar_lea.vmem [#allocation8], %s1691
        // Predicated region
        $region45: #{tpu_custom_call.1} parent=31 // pred_check
          %p1693 = pneg %p107
        $region46: #{tpu_custom_call.1} parent=31 // pred_check_branch
          %1695 = sbr.rel (%p1693) target = $region48
        $region47: #{tpu_custom_call.1} parent=31 // pred_region
          %s1696 = smul.u32 32, %s21
          %1698 = vsyncadd %s1689, 0
          %s1699 = smul.addr %s1696, 4
          %s1700 = scalar_lea.hbm %s3, %s1699
          %s1701 = sshll.u32 %s1692, 4
          %s1702 = int_to_ptr.vmem [resolvable:$true] %s1701
          %s1703 = sshll.u32 %s1700, 4
          %s1704 = int_to_ptr.hbm [resolvable:$true] %s1703
          %1709 = dma.vmem_to_hbm [thread:$0]  %s1702, 2048, %s1704, %s1689, 64, 64, 4
        $region48: #{tpu_custom_call.1} parent=31 // pred_fallthru
          _
      $region32: #{tpu_custom_call.1} parent=5 // pred_fallthru
        _
      %p1710 = scmp.le.s32.totalorder 2, %s16
      // Predicated region
      $region49: #{tpu_custom_call.1} parent=5 // pred_check
        %p1711 = pneg %p1710
      $region50: #{tpu_custom_call.1} parent=5 // pred_check_branch
        %1713 = sbr.rel (%p1711) target = $region52
      $region51: #{tpu_custom_call.1} parent=5 // pred_region
        %s1714 = ssub.s32 %s16, 2
        // Predicated region
        $region53: #{tpu_custom_call.1} parent=51 // pred_check
          %p1715 = pneg %p113
        $region54: #{tpu_custom_call.1} parent=51 // pred_check_branch
          %1717 = sbr.rel (%p1715) target = $region56
        $region55: #{tpu_custom_call.1} parent=51 // pred_region
          %s1718 = sand.u32 %s98, 1
          %s1719 = scalar_lea.sflag [#allocation4], %s1718
          %s1720 = sand.u32 %s98, 1
          %s1721 = smul.addr %s1720, 128
          %s1722 = scalar_lea.vmem [#allocation8], %s1721
          %1724 = dma.done %s1719, 2048
        $region56: #{tpu_custom_call.1} parent=51 // pred_fallthru
          _
      $region52: #{tpu_custom_call.1} parent=5 // pred_fallthru
        _
    $region6: #{tpu_custom_call.1} parent=1 // loop_footer
      %s20 = sadd.s32 1, %s16
    $region7: #{tpu_custom_call.1} parent=1 // loop_footer_branch
      %15 = sbr.rel target = $region3
    $region8: #{tpu_custom_call.1} parent=1 // loop_exit
      _
    %1725 = vsyncpa [#allocation3], 1
    %s1726 = scalar_lea.sflag [#allocation3], 1
    %1727 = vsyncpa %s1726, 1
    %1728 = vsyncpa [#allocation6], 1
    %1729 = vsyncpa [#allocation4], 1
    %s1730 = scalar_lea.sflag [#allocation4], 1
    %1731 = vsyncpa %s1730, 1

</llo_original>
